<compile_context>
chip_gen: v7x
topology: tpu7x:2x2x1
jax: 0.10.0
libtpu: 0.0.40
codegen_flags: <defaults>
</compile_context>

<pallas_src>
import functools

import jax
import jax.numpy as jnp
from jax import lax
from jax.experimental import pallas as pl
from jax.experimental.pallas import tpu as pltpu


def _round_up(x, m):
    return (x + m - 1) // m * m


def _pad_gates(w, h, h_pad):
    """Pad the last dim (4*h) to (4*h_pad), zero-padding each gate block."""
    lead = w.shape[:-1]
    w = w.reshape(lead + (4, h))
    w = jnp.pad(w, [(0, 0)] * len(lead) + [(0, 0), (0, h_pad - h)])
    return w.reshape(lead + (4 * h_pad,))


def _lstm_chunk_kernel(gx_ref, whh_ref, h0_ref, c0_ref, scale_ref, shift_ref,
                       y_ref, hT_ref, cT_ref, h_scr, c_scr,
                       *, hidden_pad, ts, t_real, needs_mask):
    """One grid step = TS timesteps of LSTM recurrence + fused eval-mode BN.

    gx_ref : (TS, B, 4*Hp) bf16  precomputed x @ W_ih + b (gate-padded)
    whh_ref: (Hp, 4*Hp)    bf16  recurrent weights (gate-padded)
    """
    s = pl.program_id(0)

    @pl.when(s == 0)
    def _init():
        h_scr[...] = h0_ref[...].astype(jnp.float32)
        c_scr[...] = c0_ref[...].astype(jnp.float32)

    Hp = hidden_pad
    scale = scale_ref[...]          # (1, Hp) f32 — BN folded scale
    shift = shift_ref[...]          # (1, Hp) f32 — BN folded shift
    whh = whh_ref[...]              # (Hp, 4Hp) bf16, held in vregs across the chunk

    def step(i, carry):
        h, c = carry                                    # f32 (B, Hp)
        gx = gx_ref[i].astype(jnp.float32)              # (B, 4Hp)
        gates = jnp.dot(h.astype(jnp.bfloat16), whh,
                        preferred_element_type=jnp.float32) + gx
        # PyTorch LSTM gate order: input, forget, cell(g), output.
        # Hp is a multiple of 128 so every slice is lane-aligned (free).
        i_g = jax.nn.sigmoid(gates[:, 0 * Hp:1 * Hp])
        f_g = jax.nn.sigmoid(gates[:, 1 * Hp:2 * Hp])
        g_g = jnp.tanh(gates[:, 2 * Hp:3 * Hp])
        o_g = jax.nn.sigmoid(gates[:, 3 * Hp:4 * Hp])
        c_new = f_g * c + i_g * g_g
        h_new = o_g * jnp.tanh(c_new)
        if needs_mask:
            # Keep h/c frozen on padded timesteps so the final state matches T.
            keep = (s * ts + i < t_real).astype(jnp.float32)
            h_new = keep * h_new + (1.0 - keep) * h
            c_new = keep * c_new + (1.0 - keep) * c
        # fused eval-mode BatchNorm1d: y = h * scale + shift
        y_ref[i] = (h_new * scale + shift).astype(y_ref.dtype)
        return h_new, c_new

    h_fin, c_fin = lax.fori_loop(0, ts, step, (h_scr[...], c_scr[...]),
                                 unroll=True)
    h_scr[...] = h_fin
    c_scr[...] = c_fin

    @pl.when(s == pl.num_programs(0) - 1)
    def _final():
        hT_ref[...] = h_fin.astype(hT_ref.dtype)
        cT_ref[...] = c_fin.astype(cT_ref.dtype)


def lstm_bn_layer(x_tm, wih_p, b_p, whh_p, h0, c0, scale_p, shift_p,
                  *, hidden_pad, ts):
    """x_tm: (T, B_pad, F) time-major.  Returns (y_pad (T_pad,B_pad,Hp), hT, cT)."""
    T, B_pad, F = x_tm.shape
    Hp = hidden_pad

    # ---- input projection hoisted out of the recurrence: one big MXU matmul ----
    gx = jnp.dot(x_tm.reshape(T * B_pad, F).astype(jnp.bfloat16), wih_p,
                 preferred_element_type=jnp.float32) + b_p          # (T*B, 4Hp) f32
    gx = gx.reshape(T, B_pad, 4 * Hp)

    num_chunks = pl.cdiv(T, ts)
    t_pad = num_chunks * ts
    if t_pad != T:
        gx = jnp.pad(gx, ((0, t_pad - T), (0, 0), (0, 0)))
    gx = gx.astype(jnp.bfloat16)                                    # halve HBM traffic

    kernel = functools.partial(_lstm_chunk_kernel, hidden_pad=Hp, ts=ts,
                               t_real=T, needs_mask=(t_pad != T))

    def invariant(shape):
        return pl.BlockSpec(shape, lambda s, _n=len(shape): (0,) * _n)

    y, hT, cT = pl.pallas_call(
        kernel,
        out_shape=(jax.ShapeDtypeStruct((t_pad, B_pad, Hp), jnp.float32),
                   jax.ShapeDtypeStruct((B_pad, Hp), jnp.float32),
                   jax.ShapeDtypeStruct((B_pad, Hp), jnp.float32)),
        grid_spec=pltpu.PrefetchScalarGridSpec(
            num_scalar_prefetch=0,
            grid=(num_chunks,),
            in_specs=[
                pl.BlockSpec((ts, B_pad, 4 * Hp), lambda s: (s, 0, 0)),  # gates_x chunk
                invariant((Hp, 4 * Hp)),                                  # W_hh^T (bf16)
                invariant((B_pad, Hp)),                                   # h0
                invariant((B_pad, Hp)),                                   # c0
                invariant((1, Hp)),                                       # BN scale
                invariant((1, Hp)),                                       # BN shift
            ],
            out_specs=[
                pl.BlockSpec((ts, B_pad, Hp), lambda s: (s, 0, 0)),       # y chunk
                invariant((B_pad, Hp)),                                   # final h
                invariant((B_pad, Hp)),                                   # final c
            ],
            scratch_shapes=[pltpu.VMEM((B_pad, Hp), jnp.float32),         # h carry (f32)
                            pltpu.VMEM((B_pad, Hp), jnp.float32)],        # c carry (f32)
        ),
        compiler_params=pltpu.CompilerParams(
            dimension_semantics=("arbitrary",),            # recurrence: sequential
            vmem_limit_bytes=48 * 1024 * 1024),            # headroom vs v7x 64 MiB
    )(gx, whh_p, h0, c0, scale_p, shift_p)
    return y, hT, cT


class CustomRNNPallas:
    """JAX/Pallas port of libreasr CustomRNN (LSTM variant, eval mode)."""

    def __init__(self, input_size, hidden_size, num_layers=1, key=None,
                 time_chunk=32, eps=1e-5):
        self.hidden_size = hidden_size
        self.hidden_pad = _round_up(hidden_size, 128)      # lane-aligned H
        self.time_chunk = time_chunk
        self._is = [input_size] + [hidden_size] * (num_layers - 1)
        self._os = [hidden_size] * num_layers
        key = jax.random.PRNGKey(0) if key is None else key

        Hp = self.hidden_pad
        self.layers = []
        for li, (isz, osz) in enumerate(zip(self._is, self._os)):
            key, k1, k2, k3, k4 = jax.random.split(key, 5)
            k = osz ** -0.5
            # PyTorch nn.LSTM stores W_ih as (4H, I); we keep the transpose (I, 4H).
            wih = jax.random.uniform(k1, (isz, 4 * osz), jnp.float32, -k, k)
            whh = jax.random.uniform(k2, (osz, 4 * osz), jnp.float32, -k, k)
            b_ih = jax.random.uniform(k3, (1, 4 * osz), jnp.float32, -k, k)
            b_hh = jax.random.uniform(k4, (1, 4 * osz), jnp.float32, -k, k)
            b = b_ih + b_hh

            # BatchNorm1d defaults (eval): gamma=1, beta=0, rmean=0, rvar=1,
            # folded into a single per-channel scale/shift.
            gamma = jnp.ones((osz,), jnp.float32)
            beta = jnp.zeros((osz,), jnp.float32)
            rmean = jnp.zeros((osz,), jnp.float32)
            rvar = jnp.ones((osz,), jnp.float32)
            scale = gamma * lax.rsqrt(rvar + eps)
            shift = beta - rmean * scale

            # Pad to lane-aligned shapes. Layer 0 consumes the raw input (feature
            # dim isz); layers >= 1 consume the padded activations (feature dim Hp).
            in_rows = isz if li == 0 else Hp
            wih_p = jnp.zeros((in_rows, 4 * osz), jnp.float32).at[:isz].set(wih)
            wih_p = _pad_gates(wih_p, osz, Hp).astype(jnp.bfloat16)   # (in_rows, 4Hp)
            b_p = _pad_gates(b, osz, Hp)                               # (1, 4Hp) f32
            whh_p = jnp.zeros((Hp, 4 * osz), jnp.float32).at[:osz].set(whh)
            whh_p = _pad_gates(whh_p, osz, Hp).astype(jnp.bfloat16)    # (Hp, 4Hp)
            scale_p = jnp.zeros((1, Hp), jnp.float32).at[0, :osz].set(scale)
            shift_p = jnp.zeros((1, Hp), jnp.float32).at[0, :osz].set(shift)
            # get_initial_state(init=torch.zeros): learnable initial states, zeros.
            h0 = jnp.zeros((1, Hp), jnp.float32)
            c0 = jnp.zeros((1, Hp), jnp.float32)
            self.layers.append(dict(wih_p=wih_p, b_p=b_p, whh_p=whh_p,
                                    scale_p=scale_p, shift_p=shift_p,
                                    h0=h0, c0=c0))

    def __call__(self, x):
        """x: (B, T, input_size) batch_first.  Returns (y (B,T,H), [(h_n, c_n), ...])."""
        # TODO(synk): pack_padded_sequence `lengths`, training-mode batch-stat BN,
        # time-reduction (reduction_indices) and the tmp-state cache are stateful /
        # data-dependent and not ported (module defaults don't use them).
        B, T, _ = x.shape
        H, Hp = self.hidden_size, self.hidden_pad
        B_pad = _round_up(B, 8)                     # sublane-aligned batch
        ts = min(self.time_chunk, T)

        x_tm = jnp.transpose(x, (1, 0, 2))          # -> (T, B, I) time-major
        if B_pad != B:
            x_tm = jnp.pad(x_tm, ((0, 0), (0, B_pad - B), (0, 0)))

        new_states = []
        for p in self.layers:
            h0 = jnp.broadcast_to(p["h0"], (B_pad, Hp))
            c0 = jnp.broadcast_to(p["c0"], (B_pad, Hp))
            y_pad, hT, cT = lstm_bn_layer(
                x_tm, p["wih_p"], p["b_p"], p["whh_p"], h0, c0,
                p["scale_p"], p["shift_p"], hidden_pad=Hp, ts=ts)
            new_states.append((hT[None, :B, :H], cT[None, :B, :H]))  # (1,B,H) like h_n/c_n
            x_tm = y_pad[:T]                        # padded activations feed the next layer
        y = jnp.transpose(x_tm[:, :B, :H], (1, 0, 2))   # back to (B, T, H)
        return y, new_states


if __name__ == "__main__":
    B, T, INPUT, HIDDEN, LAYERS = 2, 8, 16, 32, 2

    key = jax.random.PRNGKey(0)
    k_x, k_p = jax.random.split(key)
    x = jax.random.normal(k_x, (B, T, INPUT), jnp.float32)

    model = CustomRNNPallas(INPUT, HIDDEN, num_layers=LAYERS, key=k_p)
    y, states = model(x)
    y = jax.block_until_ready(y)
    for h_n, c_n in states:
        jax.block_until_ready(h_n)
        jax.block_until_ready(c_n)

    assert y.shape == (B, T, HIDDEN)
    assert len(states) == LAYERS
    assert states[0][0].shape == (1, B, HIDDEN)
    assert states[0][1].shape == (1, B, HIDDEN)
    assert jnp.all(jnp.isfinite(y))
    print("KERNEL_OK")
</pallas_src>

<mosaic_0001>
module attributes {stable_mosaic.version = 11 : i64} {
  func.func @_lstm_chunk_kernel(%arg0: i32, %arg1: memref<8x8x512xbf16, #tpu.memory_space<vmem>>, %arg2: memref<128x512xbf16, #tpu.memory_space<vmem>>, %arg3: memref<8x128xf32, #tpu.memory_space<vmem>>, %arg4: memref<8x128xf32, #tpu.memory_space<vmem>>, %arg5: memref<1x128xf32, #tpu.memory_space<vmem>>, %arg6: memref<1x128xf32, #tpu.memory_space<vmem>>, %arg7: memref<8x8x128xf32, #tpu.memory_space<vmem>>, %arg8: memref<8x128xf32, #tpu.memory_space<vmem>>, %arg9: memref<8x128xf32, #tpu.memory_space<vmem>>, %arg10: memref<8x128xf32, #tpu.memory_space<vmem>>, %arg11: memref<8x128xf32, #tpu.memory_space<vmem>>) attributes {dimension_semantics = [#tpu.dimension_semantics<arbitrary>], iteration_bounds = array<i64: 1>, scalar_prefetch = 0 : i64, scratch_operands = 2 : i64, tpu.core_type = #tpu.core_type<tc>, window_params = [{transform_indices = @transform_0, window_bounds = array<i64: 8, 8, 512>}, {pipeline_mode = #tpu.pipeline_mode<synchronous>, transform_indices = @transform_1, window_bounds = array<i64: 128, 512>}, {pipeline_mode = #tpu.pipeline_mode<synchronous>, transform_indices = @transform_2, window_bounds = array<i64: 8, 128>}, {pipeline_mode = #tpu.pipeline_mode<synchronous>, transform_indices = @transform_3, window_bounds = array<i64: 8, 128>}, {pipeline_mode = #tpu.pipeline_mode<synchronous>, transform_indices = @transform_4, window_bounds = array<i64: 1, 128>}, {pipeline_mode = #tpu.pipeline_mode<synchronous>, transform_indices = @transform_5, window_bounds = array<i64: 1, 128>}, {transform_indices = @transform_6, window_bounds = array<i64: 8, 8, 128>}, {pipeline_mode = #tpu.pipeline_mode<synchronous>, transform_indices = @transform_7, window_bounds = array<i64: 8, 128>}, {pipeline_mode = #tpu.pipeline_mode<synchronous>, transform_indices = @transform_8, window_bounds = array<i64: 8, 128>}]} {
    %c0_i32 = arith.constant 0 : i32
    %0 = arith.cmpi eq, %arg0, %c0_i32 : i32
    %1 = arith.extui %0 : i1 to i32
    %c0_i32_0 = arith.constant 0 : i32
    %2 = arith.cmpi ne, %1, %c0_i32_0 : i32
    scf.if %2 {
      %c0_80 = arith.constant 0 : index
      %c0_81 = arith.constant 0 : index
      %333 = vector.load %arg3[%c0_80, %c0_81] : memref<8x128xf32, #tpu.memory_space<vmem>>, vector<8x128xf32>
      %c0_82 = arith.constant 0 : index
      %c0_83 = arith.constant 0 : index
      %334 = vector.load %arg10[%c0_82, %c0_83] : memref<8x128xf32, #tpu.memory_space<vmem>>, vector<8x128xf32>
      tpu.vector_store %arg10[%c0_82, %c0_83], %333 {strides = array<i32>} : memref<8x128xf32, #tpu.memory_space<vmem>>, vector<8x128xf32>,
      %c0_84 = arith.constant 0 : index
      %c0_85 = arith.constant 0 : index
      %335 = vector.load %arg4[%c0_84, %c0_85] : memref<8x128xf32, #tpu.memory_space<vmem>>, vector<8x128xf32>
      %c0_86 = arith.constant 0 : index
      %c0_87 = arith.constant 0 : index
      %336 = vector.load %arg11[%c0_86, %c0_87] : memref<8x128xf32, #tpu.memory_space<vmem>>, vector<8x128xf32>
      tpu.vector_store %arg11[%c0_86, %c0_87], %335 {strides = array<i32>} : memref<8x128xf32, #tpu.memory_space<vmem>>, vector<8x128xf32>,
    } else {
    }
    %c0 = arith.constant 0 : index
    %c0_1 = arith.constant 0 : index
    %3 = vector.load %arg5[%c0, %c0_1] : memref<1x128xf32, #tpu.memory_space<vmem>>, vector<1x128xf32>
    %c0_2 = arith.constant 0 : index
    %c0_3 = arith.constant 0 : index
    %4 = vector.load %arg6[%c0_2, %c0_3] : memref<1x128xf32, #tpu.memory_space<vmem>>, vector<1x128xf32>
    %c0_4 = arith.constant 0 : index
    %c0_5 = arith.constant 0 : index
    %5 = vector.load %arg2[%c0_4, %c0_5] : memref<128x512xbf16, #tpu.memory_space<vmem>>, vector<128x512xbf16>
    %c0_6 = arith.constant 0 : index
    %c0_7 = arith.constant 0 : index
    %6 = vector.load %arg10[%c0_6, %c0_7] : memref<8x128xf32, #tpu.memory_space<vmem>>, vector<8x128xf32>
    %c0_8 = arith.constant 0 : index
    %c0_9 = arith.constant 0 : index
    %7 = vector.load %arg11[%c0_8, %c0_9] : memref<8x128xf32, #tpu.memory_space<vmem>>, vector<8x128xf32>
    %c0_i32_10 = arith.constant 0 : i32
    %8 = arith.index_cast %c0_i32_10 : i32 to index
    %c0_11 = arith.constant 0 : index
    %c0_12 = arith.constant 0 : index
    %9 = vector.load %arg1[%8, %c0_11, %c0_12] : memref<8x8x512xbf16, #tpu.memory_space<vmem>>, vector<1x8x512xbf16>
    %10 = vector.shape_cast %9 : vector<1x8x512xbf16> to vector<8x512xbf16>
    %11 = arith.extf %10 : vector<8x512xbf16> to vector<8x512xf32>
    %12 = arith.truncf %6 : vector<8x128xf32> to vector<8x128xbf16>
    %cst = arith.constant dense<0.000000e+00> : vector<8x512xf32>
    %13 = tpu.matmul %12, %5, %cst {dimension_numbers = #tpu.dot_dimension_numbers<[1], [0], [0], [1], [0, 0, 1, 1], [], []>} : vector<8x128xbf16>, vector<128x512xbf16>, vector<8x512xf32> -> vector<8x512xf32>
    %14 = arith.addf %13, %11 : vector<8x512xf32>
    %15 = vector.extract_strided_slice %14 {offsets = [0, 0], sizes = [8, 128], strides = [1, 1]} : vector<8x512xf32> to vector<8x128xf32>
    %16 = arith.negf %15 : vector<8x128xf32>
    %17 = math.exp %16 : vector<8x128xf32>
    %cst_13 = arith.constant 1.000000e+00 : f32
    %18 = vector.broadcast %cst_13 : f32 to vector<8x128xf32>
    %19 = arith.addf %18, %17 : vector<8x128xf32>
    %20 = arith.divf %18, %19 : vector<8x128xf32>
    %21 = vector.extract_strided_slice %14 {offsets = [0, 128], sizes = [8, 128], strides = [1, 1]} : vector<8x512xf32> to vector<8x128xf32>
    %22 = arith.negf %21 : vector<8x128xf32>
    %23 = math.exp %22 : vector<8x128xf32>
    %cst_14 = arith.constant 1.000000e+00 : f32
    %24 = vector.broadcast %cst_14 : f32 to vector<8x128xf32>
    %25 = arith.addf %24, %23 : vector<8x128xf32>
    %26 = arith.divf %24, %25 : vector<8x128xf32>
    %27 = vector.extract_strided_slice %14 {offsets = [0, 256], sizes = [8, 128], strides = [1, 1]} : vector<8x512xf32> to vector<8x128xf32>
    %28 = math.tanh %27 : vector<8x128xf32>
    %29 = vector.extract_strided_slice %14 {offsets = [0, 384], sizes = [8, 128], strides = [1, 1]} : vector<8x512xf32> to vector<8x128xf32>
    %30 = arith.negf %29 : vector<8x128xf32>
    %31 = math.exp %30 : vector<8x128xf32>
    %cst_15 = arith.constant 1.000000e+00 : f32
    %32 = vector.broadcast %cst_15 : f32 to vector<8x128xf32>
    %33 = arith.addf %32, %31 : vector<8x128xf32>
    %34 = arith.divf %32, %33 : vector<8x128xf32>
    %35 = arith.mulf %26, %7 : vector<8x128xf32>
    %36 = arith.mulf %20, %28 : vector<8x128xf32>
    %37 = arith.addf %35, %36 : vector<8x128xf32>
    %38 = math.tanh %37 : vector<8x128xf32>
    %39 = arith.mulf %34, %38 : vector<8x128xf32>
    %40 = vector.broadcast %3 : vector<1x128xf32> to vector<8x128xf32>
    %41 = arith.mulf %39, %40 : vector<8x128xf32>
    %42 = vector.broadcast %4 : vector<1x128xf32> to vector<8x128xf32>
    %43 = arith.addf %41, %42 : vector<8x128xf32>
    %44 = arith.index_cast %c0_i32_10 : i32 to index
    %c0_16 = arith.constant 0 : index
    %c0_17 = arith.constant 0 : index
    %45 = vector.load %arg7[%44, %c0_16, %c0_17] : memref<8x8x128xf32, #tpu.memory_space<vmem>>, vector<1x8x128xf32>
    %46 = vector.shape_cast %45 : vector<1x8x128xf32> to vector<8x128xf32>
    %47 = vector.shape_cast %43 : vector<8x128xf32> to vector<1x8x128xf32>
    tpu.vector_store %arg7[%44, %c0_16, %c0_17], %47 {strides = array<i32>} : memref<8x8x128xf32, #tpu.memory_space<vmem>>, vector<1x8x128xf32>,
    %c1_i32 = arith.constant 1 : i32
    %48 = arith.index_cast %c1_i32 : i32 to index
    %c0_18 = arith.constant 0 : index
    %c0_19 = arith.constant 0 : index
    %49 = vector.load %arg1[%48, %c0_18, %c0_19] : memref<8x8x512xbf16, #tpu.memory_space<vmem>>, vector<1x8x512xbf16>
    %50 = vector.shape_cast %49 : vector<1x8x512xbf16> to vector<8x512xbf16>
    %51 = arith.extf %50 : vector<8x512xbf16> to vector<8x512xf32>
    %52 = arith.truncf %39 : vector<8x128xf32> to vector<8x128xbf16>
    %cst_20 = arith.constant dense<0.000000e+00> : vector<8x512xf32>
    %53 = tpu.matmul %52, %5, %cst_20 {dimension_numbers = #tpu.dot_dimension_numbers<[1], [0], [0], [1], [0, 0, 1, 1], [], []>} : vector<8x128xbf16>, vector<128x512xbf16>, vector<8x512xf32> -> vector<8x512xf32>
    %54 = arith.addf %53, %51 : vector<8x512xf32>
    %55 = vector.extract_strided_slice %54 {offsets = [0, 0], sizes = [8, 128], strides = [1, 1]} : vector<8x512xf32> to vector<8x128xf32>
    %56 = arith.negf %55 : vector<8x128xf32>
    %57 = math.exp %56 : vector<8x128xf32>
    %cst_21 = arith.constant 1.000000e+00 : f32
    %58 = vector.broadcast %cst_21 : f32 to vector<8x128xf32>
    %59 = arith.addf %58, %57 : vector<8x128xf32>
    %60 = arith.divf %58, %59 : vector<8x128xf32>
    %61 = vector.extract_strided_slice %54 {offsets = [0, 128], sizes = [8, 128], strides = [1, 1]} : vector<8x512xf32> to vector<8x128xf32>
    %62 = arith.negf %61 : vector<8x128xf32>
    %63 = math.exp %62 : vector<8x128xf32>
    %cst_22 = arith.constant 1.000000e+00 : f32
    %64 = vector.broadcast %cst_22 : f32 to vector<8x128xf32>
    %65 = arith.addf %64, %63 : vector<8x128xf32>
    %66 = arith.divf %64, %65 : vector<8x128xf32>
    %67 = vector.extract_strided_slice %54 {offsets = [0, 256], sizes = [8, 128], strides = [1, 1]} : vector<8x512xf32> to vector<8x128xf32>
    %68 = math.tanh %67 : vector<8x128xf32>
    %69 = vector.extract_strided_slice %54 {offsets = [0, 384], sizes = [8, 128], strides = [1, 1]} : vector<8x512xf32> to vector<8x128xf32>
    %70 = arith.negf %69 : vector<8x128xf32>
    %71 = math.exp %70 : vector<8x128xf32>
    %cst_23 = arith.constant 1.000000e+00 : f32
    %72 = vector.broadcast %cst_23 : f32 to vector<8x128xf32>
    %73 = arith.addf %72, %71 : vector<8x128xf32>
    %74 = arith.divf %72, %73 : vector<8x128xf32>
    %75 = arith.mulf %66, %37 : vector<8x128xf32>
    %76 = arith.mulf %60, %68 : vector<8x128xf32>
    %77 = arith.addf %75, %76 : vector<8x128xf32>
    %78 = math.tanh %77 : vector<8x128xf32>
    %79 = arith.mulf %74, %78 : vector<8x128xf32>
    %80 = vector.broadcast %3 : vector<1x128xf32> to vector<8x128xf32>
    %81 = arith.mulf %79, %80 : vector<8x128xf32>
    %82 = vector.broadcast %4 : vector<1x128xf32> to vector<8x128xf32>
    %83 = arith.addf %81, %82 : vector<8x128xf32>
    %84 = arith.index_cast %c1_i32 : i32 to index
    %c0_24 = arith.constant 0 : index
    %c0_25 = arith.constant 0 : index
    %85 = vector.load %arg7[%84, %c0_24, %c0_25] : memref<8x8x128xf32, #tpu.memory_space<vmem>>, vector<1x8x128xf32>
    %86 = vector.shape_cast %85 : vector<1x8x128xf32> to vector<8x128xf32>
    %87 = vector.shape_cast %83 : vector<8x128xf32> to vector<1x8x128xf32>
    tpu.vector_store %arg7[%84, %c0_24, %c0_25], %87 {strides = array<i32>} : memref<8x8x128xf32, #tpu.memory_space<vmem>>, vector<1x8x128xf32>,
    %c2_i32 = arith.constant 2 : i32
    %88 = arith.index_cast %c2_i32 : i32 to index
    %c0_26 = arith.constant 0 : index
    %c0_27 = arith.constant 0 : index
    %89 = vector.load %arg1[%88, %c0_26, %c0_27] : memref<8x8x512xbf16, #tpu.memory_space<vmem>>, vector<1x8x512xbf16>
    %90 = vector.shape_cast %89 : vector<1x8x512xbf16> to vector<8x512xbf16>
    %91 = arith.extf %90 : vector<8x512xbf16> to vector<8x512xf32>
    %92 = arith.truncf %79 : vector<8x128xf32> to vector<8x128xbf16>
    %cst_28 = arith.constant dense<0.000000e+00> : vector<8x512xf32>
    %93 = tpu.matmul %92, %5, %cst_28 {dimension_numbers = #tpu.dot_dimension_numbers<[1], [0], [0], [1], [0, 0, 1, 1], [], []>} : vector<8x128xbf16>, vector<128x512xbf16>, vector<8x512xf32> -> vector<8x512xf32>
    %94 = arith.addf %93, %91 : vector<8x512xf32>
    %95 = vector.extract_strided_slice %94 {offsets = [0, 0], sizes = [8, 128], strides = [1, 1]} : vector<8x512xf32> to vector<8x128xf32>
    %96 = arith.negf %95 : vector<8x128xf32>
    %97 = math.exp %96 : vector<8x128xf32>
    %cst_29 = arith.constant 1.000000e+00 : f32
    %98 = vector.broadcast %cst_29 : f32 to vector<8x128xf32>
    %99 = arith.addf %98, %97 : vector<8x128xf32>
    %100 = arith.divf %98, %99 : vector<8x128xf32>
    %101 = vector.extract_strided_slice %94 {offsets = [0, 128], sizes = [8, 128], strides = [1, 1]} : vector<8x512xf32> to vector<8x128xf32>
    %102 = arith.negf %101 : vector<8x128xf32>
    %103 = math.exp %102 : vector<8x128xf32>
    %cst_30 = arith.constant 1.000000e+00 : f32
    %104 = vector.broadcast %cst_30 : f32 to vector<8x128xf32>
    %105 = arith.addf %104, %103 : vector<8x128xf32>
    %106 = arith.divf %104, %105 : vector<8x128xf32>
    %107 = vector.extract_strided_slice %94 {offsets = [0, 256], sizes = [8, 128], strides = [1, 1]} : vector<8x512xf32> to vector<8x128xf32>
    %108 = math.tanh %107 : vector<8x128xf32>
    %109 = vector.extract_strided_slice %94 {offsets = [0, 384], sizes = [8, 128], strides = [1, 1]} : vector<8x512xf32> to vector<8x128xf32>
    %110 = arith.negf %109 : vector<8x128xf32>
    %111 = math.exp %110 : vector<8x128xf32>
    %cst_31 = arith.constant 1.000000e+00 : f32
    %112 = vector.broadcast %cst_31 : f32 to vector<8x128xf32>
    %113 = arith.addf %112, %111 : vector<8x128xf32>
    %114 = arith.divf %112, %113 : vector<8x128xf32>
    %115 = arith.mulf %106, %77 : vector<8x128xf32>
    %116 = arith.mulf %100, %108 : vector<8x128xf32>
    %117 = arith.addf %115, %116 : vector<8x128xf32>
    %118 = math.tanh %117 : vector<8x128xf32>
    %119 = arith.mulf %114, %118 : vector<8x128xf32>
    %120 = vector.broadcast %3 : vector<1x128xf32> to vector<8x128xf32>
    %121 = arith.mulf %119, %120 : vector<8x128xf32>
    %122 = vector.broadcast %4 : vector<1x128xf32> to vector<8x128xf32>
    %123 = arith.addf %121, %122 : vector<8x128xf32>
    %124 = arith.index_cast %c2_i32 : i32 to index
    %c0_32 = arith.constant 0 : index
    %c0_33 = arith.constant 0 : index
    %125 = vector.load %arg7[%124, %c0_32, %c0_33] : memref<8x8x128xf32, #tpu.memory_space<vmem>>, vector<1x8x128xf32>
    %126 = vector.shape_cast %125 : vector<1x8x128xf32> to vector<8x128xf32>
    %127 = vector.shape_cast %123 : vector<8x128xf32> to vector<1x8x128xf32>
    tpu.vector_store %arg7[%124, %c0_32, %c0_33], %127 {strides = array<i32>} : memref<8x8x128xf32, #tpu.memory_space<vmem>>, vector<1x8x128xf32>,
    %c3_i32 = arith.constant 3 : i32
    %128 = arith.index_cast %c3_i32 : i32 to index
    %c0_34 = arith.constant 0 : index
    %c0_35 = arith.constant 0 : index
    %129 = vector.load %arg1[%128, %c0_34, %c0_35] : memref<8x8x512xbf16, #tpu.memory_space<vmem>>, vector<1x8x512xbf16>
    %130 = vector.shape_cast %129 : vector<1x8x512xbf16> to vector<8x512xbf16>
    %131 = arith.extf %130 : vector<8x512xbf16> to vector<8x512xf32>
    %132 = arith.truncf %119 : vector<8x128xf32> to vector<8x128xbf16>
    %cst_36 = arith.constant dense<0.000000e+00> : vector<8x512xf32>
    %133 = tpu.matmul %132, %5, %cst_36 {dimension_numbers = #tpu.dot_dimension_numbers<[1], [0], [0], [1], [0, 0, 1, 1], [], []>} : vector<8x128xbf16>, vector<128x512xbf16>, vector<8x512xf32> -> vector<8x512xf32>
    %134 = arith.addf %133, %131 : vector<8x512xf32>
    %135 = vector.extract_strided_slice %134 {offsets = [0, 0], sizes = [8, 128], strides = [1, 1]} : vector<8x512xf32> to vector<8x128xf32>
    %136 = arith.negf %135 : vector<8x128xf32>
    %137 = math.exp %136 : vector<8x128xf32>
    %cst_37 = arith.constant 1.000000e+00 : f32
    %138 = vector.broadcast %cst_37 : f32 to vector<8x128xf32>
    %139 = arith.addf %138, %137 : vector<8x128xf32>
    %140 = arith.divf %138, %139 : vector<8x128xf32>
    %141 = vector.extract_strided_slice %134 {offsets = [0, 128], sizes = [8, 128], strides = [1, 1]} : vector<8x512xf32> to vector<8x128xf32>
    %142 = arith.negf %141 : vector<8x128xf32>
    %143 = math.exp %142 : vector<8x128xf32>
    %cst_38 = arith.constant 1.000000e+00 : f32
    %144 = vector.broadcast %cst_38 : f32 to vector<8x128xf32>
    %145 = arith.addf %144, %143 : vector<8x128xf32>
    %146 = arith.divf %144, %145 : vector<8x128xf32>
    %147 = vector.extract_strided_slice %134 {offsets = [0, 256], sizes = [8, 128], strides = [1, 1]} : vector<8x512xf32> to vector<8x128xf32>
    %148 = math.tanh %147 : vector<8x128xf32>
    %149 = vector.extract_strided_slice %134 {offsets = [0, 384], sizes = [8, 128], strides = [1, 1]} : vector<8x512xf32> to vector<8x128xf32>
    %150 = arith.negf %149 : vector<8x128xf32>
    %151 = math.exp %150 : vector<8x128xf32>
    %cst_39 = arith.constant 1.000000e+00 : f32
    %152 = vector.broadcast %cst_39 : f32 to vector<8x128xf32>
    %153 = arith.addf %152, %151 : vector<8x128xf32>
    %154 = arith.divf %152, %153 : vector<8x128xf32>
    %155 = arith.mulf %146, %117 : vector<8x128xf32>
    %156 = arith.mulf %140, %148 : vector<8x128xf32>
    %157 = arith.addf %155, %156 : vector<8x128xf32>
    %158 = math.tanh %157 : vector<8x128xf32>
    %159 = arith.mulf %154, %158 : vector<8x128xf32>
    %160 = vector.broadcast %3 : vector<1x128xf32> to vector<8x128xf32>
    %161 = arith.mulf %159, %160 : vector<8x128xf32>
    %162 = vector.broadcast %4 : vector<1x128xf32> to vector<8x128xf32>
    %163 = arith.addf %161, %162 : vector<8x128xf32>
    %164 = arith.index_cast %c3_i32 : i32 to index
    %c0_40 = arith.constant 0 : index
    %c0_41 = arith.constant 0 : index
    %165 = vector.load %arg7[%164, %c0_40, %c0_41] : memref<8x8x128xf32, #tpu.memory_space<vmem>>, vector<1x8x128xf32>
    %166 = vector.shape_cast %165 : vector<1x8x128xf32> to vector<8x128xf32>
    %167 = vector.shape_cast %163 : vector<8x128xf32> to vector<1x8x128xf32>
    tpu.vector_store %arg7[%164, %c0_40, %c0_41], %167 {strides = array<i32>} : memref<8x8x128xf32, #tpu.memory_space<vmem>>, vector<1x8x128xf32>,
    %c4_i32 = arith.constant 4 : i32
    %168 = arith.index_cast %c4_i32 : i32 to index
    %c0_42 = arith.constant 0 : index
    %c0_43 = arith.constant 0 : index
    %169 = vector.load %arg1[%168, %c0_42, %c0_43] : memref<8x8x512xbf16, #tpu.memory_space<vmem>>, vector<1x8x512xbf16>
    %170 = vector.shape_cast %169 : vector<1x8x512xbf16> to vector<8x512xbf16>
    %171 = arith.extf %170 : vector<8x512xbf16> to vector<8x512xf32>
    %172 = arith.truncf %159 : vector<8x128xf32> to vector<8x128xbf16>
    %cst_44 = arith.constant dense<0.000000e+00> : vector<8x512xf32>
    %173 = tpu.matmul %172, %5, %cst_44 {dimension_numbers = #tpu.dot_dimension_numbers<[1], [0], [0], [1], [0, 0, 1, 1], [], []>} : vector<8x128xbf16>, vector<128x512xbf16>, vector<8x512xf32> -> vector<8x512xf32>
    %174 = arith.addf %173, %171 : vector<8x512xf32>
    %175 = vector.extract_strided_slice %174 {offsets = [0, 0], sizes = [8, 128], strides = [1, 1]} : vector<8x512xf32> to vector<8x128xf32>
    %176 = arith.negf %175 : vector<8x128xf32>
    %177 = math.exp %176 : vector<8x128xf32>
    %cst_45 = arith.constant 1.000000e+00 : f32
    %178 = vector.broadcast %cst_45 : f32 to vector<8x128xf32>
    %179 = arith.addf %178, %177 : vector<8x128xf32>
    %180 = arith.divf %178, %179 : vector<8x128xf32>
    %181 = vector.extract_strided_slice %174 {offsets = [0, 128], sizes = [8, 128], strides = [1, 1]} : vector<8x512xf32> to vector<8x128xf32>
    %182 = arith.negf %181 : vector<8x128xf32>
    %183 = math.exp %182 : vector<8x128xf32>
    %cst_46 = arith.constant 1.000000e+00 : f32
    %184 = vector.broadcast %cst_46 : f32 to vector<8x128xf32>
    %185 = arith.addf %184, %183 : vector<8x128xf32>
    %186 = arith.divf %184, %185 : vector<8x128xf32>
    %187 = vector.extract_strided_slice %174 {offsets = [0, 256], sizes = [8, 128], strides = [1, 1]} : vector<8x512xf32> to vector<8x128xf32>
    %188 = math.tanh %187 : vector<8x128xf32>
    %189 = vector.extract_strided_slice %174 {offsets = [0, 384], sizes = [8, 128], strides = [1, 1]} : vector<8x512xf32> to vector<8x128xf32>
    %190 = arith.negf %189 : vector<8x128xf32>
    %191 = math.exp %190 : vector<8x128xf32>
    %cst_47 = arith.constant 1.000000e+00 : f32
    %192 = vector.broadcast %cst_47 : f32 to vector<8x128xf32>
    %193 = arith.addf %192, %191 : vector<8x128xf32>
    %194 = arith.divf %192, %193 : vector<8x128xf32>
    %195 = arith.mulf %186, %157 : vector<8x128xf32>
    %196 = arith.mulf %180, %188 : vector<8x128xf32>
    %197 = arith.addf %195, %196 : vector<8x128xf32>
    %198 = math.tanh %197 : vector<8x128xf32>
    %199 = arith.mulf %194, %198 : vector<8x128xf32>
    %200 = vector.broadcast %3 : vector<1x128xf32> to vector<8x128xf32>
    %201 = arith.mulf %199, %200 : vector<8x128xf32>
    %202 = vector.broadcast %4 : vector<1x128xf32> to vector<8x128xf32>
    %203 = arith.addf %201, %202 : vector<8x128xf32>
    %204 = arith.index_cast %c4_i32 : i32 to index
    %c0_48 = arith.constant 0 : index
    %c0_49 = arith.constant 0 : index
    %205 = vector.load %arg7[%204, %c0_48, %c0_49] : memref<8x8x128xf32, #tpu.memory_space<vmem>>, vector<1x8x128xf32>
    %206 = vector.shape_cast %205 : vector<1x8x128xf32> to vector<8x128xf32>
    %207 = vector.shape_cast %203 : vector<8x128xf32> to vector<1x8x128xf32>
    tpu.vector_store %arg7[%204, %c0_48, %c0_49], %207 {strides = array<i32>} : memref<8x8x128xf32, #tpu.memory_space<vmem>>, vector<1x8x128xf32>,
    %c5_i32 = arith.constant 5 : i32
    %208 = arith.index_cast %c5_i32 : i32 to index
    %c0_50 = arith.constant 0 : index
    %c0_51 = arith.constant 0 : index
    %209 = vector.load %arg1[%208, %c0_50, %c0_51] : memref<8x8x512xbf16, #tpu.memory_space<vmem>>, vector<1x8x512xbf16>
    %210 = vector.shape_cast %209 : vector<1x8x512xbf16> to vector<8x512xbf16>
    %211 = arith.extf %210 : vector<8x512xbf16> to vector<8x512xf32>
    %212 = arith.truncf %199 : vector<8x128xf32> to vector<8x128xbf16>
    %cst_52 = arith.constant dense<0.000000e+00> : vector<8x512xf32>
    %213 = tpu.matmul %212, %5, %cst_52 {dimension_numbers = #tpu.dot_dimension_numbers<[1], [0], [0], [1], [0, 0, 1, 1], [], []>} : vector<8x128xbf16>, vector<128x512xbf16>, vector<8x512xf32> -> vector<8x512xf32>
    %214 = arith.addf %213, %211 : vector<8x512xf32>
    %215 = vector.extract_strided_slice %214 {offsets = [0, 0], sizes = [8, 128], strides = [1, 1]} : vector<8x512xf32> to vector<8x128xf32>
    %216 = arith.negf %215 : vector<8x128xf32>
    %217 = math.exp %216 : vector<8x128xf32>
    %cst_53 = arith.constant 1.000000e+00 : f32
    %218 = vector.broadcast %cst_53 : f32 to vector<8x128xf32>
    %219 = arith.addf %218, %217 : vector<8x128xf32>
    %220 = arith.divf %218, %219 : vector<8x128xf32>
    %221 = vector.extract_strided_slice %214 {offsets = [0, 128], sizes = [8, 128], strides = [1, 1]} : vector<8x512xf32> to vector<8x128xf32>
    %222 = arith.negf %221 : vector<8x128xf32>
    %223 = math.exp %222 : vector<8x128xf32>
    %cst_54 = arith.constant 1.000000e+00 : f32
    %224 = vector.broadcast %cst_54 : f32 to vector<8x128xf32>
    %225 = arith.addf %224, %223 : vector<8x128xf32>
    %226 = arith.divf %224, %225 : vector<8x128xf32>
    %227 = vector.extract_strided_slice %214 {offsets = [0, 256], sizes = [8, 128], strides = [1, 1]} : vector<8x512xf32> to vector<8x128xf32>
    %228 = math.tanh %227 : vector<8x128xf32>
    %229 = vector.extract_strided_slice %214 {offsets = [0, 384], sizes = [8, 128], strides = [1, 1]} : vector<8x512xf32> to vector<8x128xf32>
    %230 = arith.negf %229 : vector<8x128xf32>
    %231 = math.exp %230 : vector<8x128xf32>
    %cst_55 = arith.constant 1.000000e+00 : f32
    %232 = vector.broadcast %cst_55 : f32 to vector<8x128xf32>
    %233 = arith.addf %232, %231 : vector<8x128xf32>
    %234 = arith.divf %232, %233 : vector<8x128xf32>
    %235 = arith.mulf %226, %197 : vector<8x128xf32>
    %236 = arith.mulf %220, %228 : vector<8x128xf32>
    %237 = arith.addf %235, %236 : vector<8x128xf32>
    %238 = math.tanh %237 : vector<8x128xf32>
    %239 = arith.mulf %234, %238 : vector<8x128xf32>
    %240 = vector.broadcast %3 : vector<1x128xf32> to vector<8x128xf32>
    %241 = arith.mulf %239, %240 : vector<8x128xf32>
    %242 = vector.broadcast %4 : vector<1x128xf32> to vector<8x128xf32>
    %243 = arith.addf %241, %242 : vector<8x128xf32>
    %244 = arith.index_cast %c5_i32 : i32 to index
    %c0_56 = arith.constant 0 : index
    %c0_57 = arith.constant 0 : index
    %245 = vector.load %arg7[%244, %c0_56, %c0_57] : memref<8x8x128xf32, #tpu.memory_space<vmem>>, vector<1x8x128xf32>
    %246 = vector.shape_cast %245 : vector<1x8x128xf32> to vector<8x128xf32>
    %247 = vector.shape_cast %243 : vector<8x128xf32> to vector<1x8x128xf32>
    tpu.vector_store %arg7[%244, %c0_56, %c0_57], %247 {strides = array<i32>} : memref<8x8x128xf32, #tpu.memory_space<vmem>>, vector<1x8x128xf32>,
    %c6_i32 = arith.constant 6 : i32
    %248 = arith.index_cast %c6_i32 : i32 to index
    %c0_58 = arith.constant 0 : index
    %c0_59 = arith.constant 0 : index
    %249 = vector.load %arg1[%248, %c0_58, %c0_59] : memref<8x8x512xbf16, #tpu.memory_space<vmem>>, vector<1x8x512xbf16>
    %250 = vector.shape_cast %249 : vector<1x8x512xbf16> to vector<8x512xbf16>
    %251 = arith.extf %250 : vector<8x512xbf16> to vector<8x512xf32>
    %252 = arith.truncf %239 : vector<8x128xf32> to vector<8x128xbf16>
    %cst_60 = arith.constant dense<0.000000e+00> : vector<8x512xf32>
    %253 = tpu.matmul %252, %5, %cst_60 {dimension_numbers = #tpu.dot_dimension_numbers<[1], [0], [0], [1], [0, 0, 1, 1], [], []>} : vector<8x128xbf16>, vector<128x512xbf16>, vector<8x512xf32> -> vector<8x512xf32>
    %254 = arith.addf %253, %251 : vector<8x512xf32>
    %255 = vector.extract_strided_slice %254 {offsets = [0, 0], sizes = [8, 128], strides = [1, 1]} : vector<8x512xf32> to vector<8x128xf32>
    %256 = arith.negf %255 : vector<8x128xf32>
    %257 = math.exp %256 : vector<8x128xf32>
    %cst_61 = arith.constant 1.000000e+00 : f32
    %258 = vector.broadcast %cst_61 : f32 to vector<8x128xf32>
    %259 = arith.addf %258, %257 : vector<8x128xf32>
    %260 = arith.divf %258, %259 : vector<8x128xf32>
    %261 = vector.extract_strided_slice %254 {offsets = [0, 128], sizes = [8, 128], strides = [1, 1]} : vector<8x512xf32> to vector<8x128xf32>
    %262 = arith.negf %261 : vector<8x128xf32>
    %263 = math.exp %262 : vector<8x128xf32>
    %cst_62 = arith.constant 1.000000e+00 : f32
    %264 = vector.broadcast %cst_62 : f32 to vector<8x128xf32>
    %265 = arith.addf %264, %263 : vector<8x128xf32>
    %266 = arith.divf %264, %265 : vector<8x128xf32>
    %267 = vector.extract_strided_slice %254 {offsets = [0, 256], sizes = [8, 128], strides = [1, 1]} : vector<8x512xf32> to vector<8x128xf32>
    %268 = math.tanh %267 : vector<8x128xf32>
    %269 = vector.extract_strided_slice %254 {offsets = [0, 384], sizes = [8, 128], strides = [1, 1]} : vector<8x512xf32> to vector<8x128xf32>
    %270 = arith.negf %269 : vector<8x128xf32>
    %271 = math.exp %270 : vector<8x128xf32>
    %cst_63 = arith.constant 1.000000e+00 : f32
    %272 = vector.broadcast %cst_63 : f32 to vector<8x128xf32>
    %273 = arith.addf %272, %271 : vector<8x128xf32>
    %274 = arith.divf %272, %273 : vector<8x128xf32>
    %275 = arith.mulf %266, %237 : vector<8x128xf32>
    %276 = arith.mulf %260, %268 : vector<8x128xf32>
    %277 = arith.addf %275, %276 : vector<8x128xf32>
    %278 = math.tanh %277 : vector<8x128xf32>
    %279 = arith.mulf %274, %278 : vector<8x128xf32>
    %280 = vector.broadcast %3 : vector<1x128xf32> to vector<8x128xf32>
    %281 = arith.mulf %279, %280 : vector<8x128xf32>
    %282 = vector.broadcast %4 : vector<1x128xf32> to vector<8x128xf32>
    %283 = arith.addf %281, %282 : vector<8x128xf32>
    %284 = arith.index_cast %c6_i32 : i32 to index
    %c0_64 = arith.constant 0 : index
    %c0_65 = arith.constant 0 : index
    %285 = vector.load %arg7[%284, %c0_64, %c0_65] : memref<8x8x128xf32, #tpu.memory_space<vmem>>, vector<1x8x128xf32>
    %286 = vector.shape_cast %285 : vector<1x8x128xf32> to vector<8x128xf32>
    %287 = vector.shape_cast %283 : vector<8x128xf32> to vector<1x8x128xf32>
    tpu.vector_store %arg7[%284, %c0_64, %c0_65], %287 {strides = array<i32>} : memref<8x8x128xf32, #tpu.memory_space<vmem>>, vector<1x8x128xf32>,
    %c7_i32 = arith.constant 7 : i32
    %288 = arith.index_cast %c7_i32 : i32 to index
    %c0_66 = arith.constant 0 : index
    %c0_67 = arith.constant 0 : index
    %289 = vector.load %arg1[%288, %c0_66, %c0_67] : memref<8x8x512xbf16, #tpu.memory_space<vmem>>, vector<1x8x512xbf16>
    %290 = vector.shape_cast %289 : vector<1x8x512xbf16> to vector<8x512xbf16>
    %291 = arith.extf %290 : vector<8x512xbf16> to vector<8x512xf32>
    %292 = arith.truncf %279 : vector<8x128xf32> to vector<8x128xbf16>
    %cst_68 = arith.constant dense<0.000000e+00> : vector<8x512xf32>
    %293 = tpu.matmul %292, %5, %cst_68 {dimension_numbers = #tpu.dot_dimension_numbers<[1], [0], [0], [1], [0, 0, 1, 1], [], []>} : vector<8x128xbf16>, vector<128x512xbf16>, vector<8x512xf32> -> vector<8x512xf32>
    %294 = arith.addf %293, %291 : vector<8x512xf32>
    %295 = vector.extract_strided_slice %294 {offsets = [0, 0], sizes = [8, 128], strides = [1, 1]} : vector<8x512xf32> to vector<8x128xf32>
    %296 = arith.negf %295 : vector<8x128xf32>
    %297 = math.exp %296 : vector<8x128xf32>
    %cst_69 = arith.constant 1.000000e+00 : f32
    %298 = vector.broadcast %cst_69 : f32 to vector<8x128xf32>
    %299 = arith.addf %298, %297 : vector<8x128xf32>
    %300 = arith.divf %298, %299 : vector<8x128xf32>
    %301 = vector.extract_strided_slice %294 {offsets = [0, 128], sizes = [8, 128], strides = [1, 1]} : vector<8x512xf32> to vector<8x128xf32>
    %302 = arith.negf %301 : vector<8x128xf32>
    %303 = math.exp %302 : vector<8x128xf32>
    %cst_70 = arith.constant 1.000000e+00 : f32
    %304 = vector.broadcast %cst_70 : f32 to vector<8x128xf32>
    %305 = arith.addf %304, %303 : vector<8x128xf32>
    %306 = arith.divf %304, %305 : vector<8x128xf32>
    %307 = vector.extract_strided_slice %294 {offsets = [0, 256], sizes = [8, 128], strides = [1, 1]} : vector<8x512xf32> to vector<8x128xf32>
    %308 = math.tanh %307 : vector<8x128xf32>
    %309 = vector.extract_strided_slice %294 {offsets = [0, 384], sizes = [8, 128], strides = [1, 1]} : vector<8x512xf32> to vector<8x128xf32>
    %310 = arith.negf %309 : vector<8x128xf32>
    %311 = math.exp %310 : vector<8x128xf32>
    %cst_71 = arith.constant 1.000000e+00 : f32
    %312 = vector.broadcast %cst_71 : f32 to vector<8x128xf32>
    %313 = arith.addf %312, %311 : vector<8x128xf32>
    %314 = arith.divf %312, %313 : vector<8x128xf32>
    %315 = arith.mulf %306, %277 : vector<8x128xf32>
    %316 = arith.mulf %300, %308 : vector<8x128xf32>
    %317 = arith.addf %315, %316 : vector<8x128xf32>
    %318 = math.tanh %317 : vector<8x128xf32>
    %319 = arith.mulf %314, %318 : vector<8x128xf32>
    %320 = vector.broadcast %3 : vector<1x128xf32> to vector<8x128xf32>
    %321 = arith.mulf %319, %320 : vector<8x128xf32>
    %322 = vector.broadcast %4 : vector<1x128xf32> to vector<8x128xf32>
    %323 = arith.addf %321, %322 : vector<8x128xf32>
    %324 = arith.index_cast %c7_i32 : i32 to index
    %c0_72 = arith.constant 0 : index
    %c0_73 = arith.constant 0 : index
    %325 = vector.load %arg7[%324, %c0_72, %c0_73] : memref<8x8x128xf32, #tpu.memory_space<vmem>>, vector<1x8x128xf32>
    %326 = vector.shape_cast %325 : vector<1x8x128xf32> to vector<8x128xf32>
    %327 = vector.shape_cast %323 : vector<8x128xf32> to vector<1x8x128xf32>
    tpu.vector_store %arg7[%324, %c0_72, %c0_73], %327 {strides = array<i32>} : memref<8x8x128xf32, #tpu.memory_space<vmem>>, vector<1x8x128xf32>,
    %c8_i32 = arith.constant 8 : i32
    %c0_74 = arith.constant 0 : index
    %c0_75 = arith.constant 0 : index
    %328 = vector.load %arg10[%c0_74, %c0_75] : memref<8x128xf32, #tpu.memory_space<vmem>>, vector<8x128xf32>
    tpu.vector_store %arg10[%c0_74, %c0_75], %319 {strides = array<i32>} : memref<8x128xf32, #tpu.memory_space<vmem>>, vector<8x128xf32>,
    %c0_76 = arith.constant 0 : index
    %c0_77 = arith.constant 0 : index
    %329 = vector.load %arg11[%c0_76, %c0_77] : memref<8x128xf32, #tpu.memory_space<vmem>>, vector<8x128xf32>
    tpu.vector_store %arg11[%c0_76, %c0_77], %317 {strides = array<i32>} : memref<8x128xf32, #tpu.memory_space<vmem>>, vector<8x128xf32>,
    %c0_i32_78 = arith.constant 0 : i32
    %330 = arith.cmpi eq, %arg0, %c0_i32_78 : i32
    %331 = arith.extui %330 : i1 to i32
    %c0_i32_79 = arith.constant 0 : i32
    %332 = arith.cmpi ne, %331, %c0_i32_79 : i32
    scf.if %332 {
      %c0_80 = arith.constant 0 : index
      %c0_81 = arith.constant 0 : index
      %333 = vector.load %arg8[%c0_80, %c0_81] : memref<8x128xf32, #tpu.memory_space<vmem>>, vector<8x128xf32>
      tpu.vector_store %arg8[%c0_80, %c0_81], %319 {strides = array<i32>} : memref<8x128xf32, #tpu.memory_space<vmem>>, vector<8x128xf32>,
      %c0_82 = arith.constant 0 : index
      %c0_83 = arith.constant 0 : index
      %334 = vector.load %arg9[%c0_82, %c0_83] : memref<8x128xf32, #tpu.memory_space<vmem>>, vector<8x128xf32>
      tpu.vector_store %arg9[%c0_82, %c0_83], %317 {strides = array<i32>} : memref<8x128xf32, #tpu.memory_space<vmem>>, vector<8x128xf32>,
    } else {
    }
    return
  }
  func.func @transform_0(%arg0: i32) -> (i32, i32, i32) {
    %c0_i32 = arith.constant 0 : i32
    %c0_i32_0 = arith.constant 0 : i32
    %c0_i32_1 = arith.constant 0 : i32
    return %arg0, %c0_i32, %c0_i32_0 : i32, i32, i32
  }
  func.func @transform_1(%arg0: i32) -> (i32, i32) {
    %c0_i32 = arith.constant 0 : i32
    %c0_i32_0 = arith.constant 0 : i32
    %c0_i32_1 = arith.constant 0 : i32
    return %c0_i32, %c0_i32_0 : i32, i32
  }
  func.func @transform_2(%arg0: i32) -> (i32, i32) {
    %c0_i32 = arith.constant 0 : i32
    %c0_i32_0 = arith.constant 0 : i32
    %c0_i32_1 = arith.constant 0 : i32
    return %c0_i32, %c0_i32_0 : i32, i32
  }
  func.func @transform_3(%arg0: i32) -> (i32, i32) {
    %c0_i32 = arith.constant 0 : i32
    %c0_i32_0 = arith.constant 0 : i32
    %c0_i32_1 = arith.constant 0 : i32
    return %c0_i32, %c0_i32_0 : i32, i32
  }
  func.func @transform_4(%arg0: i32) -> (i32, i32) {
    %c0_i32 = arith.constant 0 : i32
    %c0_i32_0 = arith.constant 0 : i32
    %c0_i32_1 = arith.constant 0 : i32
    return %c0_i32, %c0_i32_0 : i32, i32
  }
  func.func @transform_5(%arg0: i32) -> (i32, i32) {
    %c0_i32 = arith.constant 0 : i32
    %c0_i32_0 = arith.constant 0 : i32
    %c0_i32_1 = arith.constant 0 : i32
    return %c0_i32, %c0_i32_0 : i32, i32
  }
  func.func @transform_6(%arg0: i32) -> (i32, i32, i32) {
    %c0_i32 = arith.constant 0 : i32
    %c0_i32_0 = arith.constant 0 : i32
    %c0_i32_1 = arith.constant 0 : i32
    return %arg0, %c0_i32, %c0_i32_0 : i32, i32, i32
  }
  func.func @transform_7(%arg0: i32) -> (i32, i32) {
    %c0_i32 = arith.constant 0 : i32
    %c0_i32_0 = arith.constant 0 : i32
    %c0_i32_1 = arith.constant 0 : i32
    return %c0_i32, %c0_i32_0 : i32, i32
  }
  func.func @transform_8(%arg0: i32) -> (i32, i32) {
    %c0_i32 = arith.constant 0 : i32
    %c0_i32_0 = arith.constant 0 : i32
    %c0_i32_1 = arith.constant 0 : i32
    return %c0_i32, %c0_i32_0 : i32, i32
  }
}

</mosaic_0001>

<llo_original>
// kernel: tpu_custom_call.1
$region0: #{tpu_custom_call.1}
  #allocation0 [shape = 'u32[]', space=smem, size = 0x4, offset = 0x4, fixed_abs, tag = 'smem constant byte address 0x4 - core index']
  #allocation1 [shape = 'u32[144,128]{1,0:T(1,128)}', space=vmem, size = 0x12000, scoped, tag = 'internal scratch']
  #allocation2 [shape = 'f32[8,128]{1,0:T(8,128)}', space=vmem, size = 0x1000, scoped, tag = 'scratch operand']
  #allocation3 [shape = 'f32[8,128]{1,0:T(8,128)}', space=vmem, size = 0x1000, scoped, tag = 'scratch operand']
  %s0 = inlined_call_operand.hbm [shape: bf16[8,8,512], index: 0, kind: input, shape index: {}]
  %s1 = inlined_call_operand.hbm [shape: bf16[128,512], index: 1, kind: input, shape index: {}]
  %s2 = inlined_call_operand.hbm [shape: f32[8,128], index: 2, kind: input, shape index: {}]
  %s3 = inlined_call_operand.vmem [shape: f32[8,128], index: 3, kind: input, shape index: {}]
  %s4 = inlined_call_operand.vmem [shape: f32[1,128], index: 4, kind: input, shape index: {}]
  %s5 = inlined_call_operand.vmem [shape: f32[1,128], index: 5, kind: input, shape index: {}]
  %s6 = inlined_call_operand.hbm [shape: f32[8,8,128], index: 6, kind: output, shape index: {0}]
  %s7 = inlined_call_operand.hbm [shape: f32[8,128], index: 7, kind: output, shape index: {1}]
  %s8 = inlined_call_operand.hbm [shape: f32[8,128], index: 8, kind: output, shape index: {2}]
  %9 = xla_tuple %s6, %s7, %s8
  %s10 = sld [smem:[#allocation0]]
  $region70: #{tpu_custom_call.1} parent=0
    _
  %s12 = ssub.s32 1, %s10
  %s13 = scalar_select 0, %s12, %s10
  $region1: #{tpu_custom_call.1} parent=0
    #allocation4 [shape = 'u8[65536]{0}', space=vmem, size = 0x10000, scoped, tag = 'input window, operand 0, single buffered']
    #allocation5 [shape = 's32[1]{0}', space=sflag, size = 0x4, scoped, tag = 'scoped memory for tpu_custom_call.1']
    #allocation6 [shape = 's32[1]{0}', space=sflag, size = 0x4, scoped, tag = 'scoped memory for tpu_custom_call.1']
    #allocation7 [shape = 'u8[131072]{0}', space=vmem, size = 0x20000, scoped, tag = 'input window, operand 1, single buffered']
    #allocation8 [shape = 's32[1]{0}', space=sflag, size = 0x4, scoped, tag = 'scoped memory for tpu_custom_call.1']
    #allocation9 [shape = 'u8[4096]{0}', space=vmem, size = 0x1000, scoped, tag = 'input window, operand 2, single buffered']
    #allocation10 [shape = 'u8[32768]{0}', space=vmem, size = 0x8000, scoped, tag = 'output window, operand 0, single buffered']
    #allocation11 [shape = 'u8[4096]{0}', space=vmem, size = 0x1000, scoped, tag = 'output window, operand 1, single buffered']
    #allocation12 [shape = 's32[1]{0}', space=sflag, size = 0x4, scoped, tag = 'scoped memory for tpu_custom_call.1']
    #allocation13 [shape = 'u8[4096]{0}', space=vmem, size = 0x1000, scoped, tag = 'output window, operand 2, single buffered']
    %14 = vsyncpa [#allocation5], 0
    %15 = vsyncpa [#allocation8], 0
    %16 = vsyncpa [#allocation6], 0
    %17 = vsyncpa [#allocation12], 0
    // Predicated region
    $region2: #{tpu_custom_call.1} parent=1 // pred_check
      _
    $region3: #{tpu_custom_call.1} parent=1 // pred_check_branch
      %19 = sbr.rel (0) target = $region5
    $region4: #{tpu_custom_call.1} parent=1 // pred_region
      %s21 = ssub.s32 2048, 2048
      %22 = vsyncadd [#allocation5], %s21
      %s23 = sshll.u32 [#allocation4], 4
      %s24 = int_to_ptr.vmem [resolvable:$true] %s23
      %29 = dma.hbm_to_vmem [thread:$0]  %s0, 2048, %s24, [#allocation5], 256, 256, 16
    $region5: #{tpu_custom_call.1} parent=1 // pred_fallthru
      _
    // Predicated region
    $region6: #{tpu_custom_call.1} parent=1 // pred_check
      _
    $region7: #{tpu_custom_call.1} parent=1 // pred_check_branch
      %31 = sbr.rel (0) target = $region9
    $region8: #{tpu_custom_call.1} parent=1 // pred_region
      %s33 = ssub.s32 4096, 4096
      %34 = vsyncadd [#allocation8], %s33
      %s35 = sshll.u32 [#allocation7], 4
      %s36 = int_to_ptr.vmem [resolvable:$true] %s35
      %41 = dma.hbm_to_vmem [thread:$0]  %s1, 4096, %s36, [#allocation8], 256, 256, 16
    $region9: #{tpu_custom_call.1} parent=1 // pred_fallthru
      _
    // Predicated region
    $region10: #{tpu_custom_call.1} parent=1 // pred_check
      _
    $region11: #{tpu_custom_call.1} parent=1 // pred_check_branch
      %43 = sbr.rel (0) target = $region13
    $region12: #{tpu_custom_call.1} parent=1 // pred_region
      %s45 = ssub.s32 128, 128
      %46 = vsyncadd [#allocation8], %s45
      %s48 = sshll.u32 [#allocation9], 4
      %s49 = int_to_ptr.vmem [resolvable:$true] %s48
      %51 = dma.hbm_to_vmem [thread:$0]  %s2, 128, %s49, [#allocation8]
    $region13: #{tpu_custom_call.1} parent=1 // pred_fallthru
      _
    // Predicated region
    $region14: #{tpu_custom_call.1} parent=1 // pred_check
      _
    $region15: #{tpu_custom_call.1} parent=1 // pred_check_branch
      %53 = sbr.rel (0) target = $region17
    $region16: #{tpu_custom_call.1} parent=1 // pred_region
      _
    $region17: #{tpu_custom_call.1} parent=1 // pred_fallthru
      _
    // Predicated region
    $region18: #{tpu_custom_call.1} parent=1 // pred_check
      _
    $region19: #{tpu_custom_call.1} parent=1 // pred_check_branch
      %55 = sbr.rel (0) target = $region21
    $region20: #{tpu_custom_call.1} parent=1 // pred_region
      _
    $region21: #{tpu_custom_call.1} parent=1 // pred_fallthru
      _
    // Predicated region
    $region22: #{tpu_custom_call.1} parent=1 // pred_check
      _
    $region23: #{tpu_custom_call.1} parent=1 // pred_check_branch
      %57 = sbr.rel (0) target = $region25
    $region24: #{tpu_custom_call.1} parent=1 // pred_region
      _
    $region25: #{tpu_custom_call.1} parent=1 // pred_fallthru
      _
    // Predicated region
    $region26: #{tpu_custom_call.1} parent=1 // pred_check
      _
    $region27: #{tpu_custom_call.1} parent=1 // pred_check_branch
      %59 = sbr.rel (0) target = $region29
    $region28: #{tpu_custom_call.1} parent=1 // pred_region
      %60 = dma.done [#allocation5], 2048
    $region29: #{tpu_custom_call.1} parent=1 // pred_fallthru
      _
    // Predicated region
    $region30: #{tpu_custom_call.1} parent=1 // pred_check
      _
    $region31: #{tpu_custom_call.1} parent=1 // pred_check_branch
      %62 = sbr.rel (0) target = $region33
    $region32: #{tpu_custom_call.1} parent=1 // pred_region
      %63 = dma.done [#allocation8], 4096
    $region33: #{tpu_custom_call.1} parent=1 // pred_fallthru
      _
    // Predicated region
    $region34: #{tpu_custom_call.1} parent=1 // pred_check
      _
    $region35: #{tpu_custom_call.1} parent=1 // pred_check_branch
      %65 = sbr.rel (0) target = $region37
    $region36: #{tpu_custom_call.1} parent=1 // pred_region
      %66 = dma.done [#allocation8], 128
    $region37: #{tpu_custom_call.1} parent=1 // pred_fallthru
      _
    %p68 = scmp.eq.s32.totalorder 0, 0
    // Predicated region
    $region38: #{tpu_custom_call.1} parent=1 // pred_check
      %p69 = pneg %p68
    $region39: #{tpu_custom_call.1} parent=1 // pred_check_branch
      %71 = sbr.rel (%p69) target = $region41
    $region40: #{tpu_custom_call.1} parent=1 // pred_region
      %v72 = vld [vmem:[#allocation9] sm:$0xff]
      %73 = vst [vmem:[#allocation2] sm:$0xff] %v72
      %v74 = vld [vmem:[%s3] sm:$0xff]
      %75 = vst [vmem:[#allocation3] sm:$0xff] %v74
    $region41: #{tpu_custom_call.1} parent=1 // pred_fallthru
      _
    %v76 = vld [vmem:[%s4] sm:$0x1]
    %v77 = vld [vmem:[%s5] sm:$0x1]
    %v78 = vld [vmem:[#allocation7] sm:$0xff]
    %v79 = vld [vmem:[#allocation7 + $0x8] sm:$0xff]
    %v80 = vld [vmem:[#allocation7 + $0x10] sm:$0xff]
    %v81 = vld [vmem:[#allocation7 + $0x18] sm:$0xff]
    %v82 = vld [vmem:[#allocation7 + $0x20] sm:$0xff]
    %v83 = vld [vmem:[#allocation7 + $0x28] sm:$0xff]
    %v84 = vld [vmem:[#allocation7 + $0x30] sm:$0xff]
    %v85 = vld [vmem:[#allocation7 + $0x38] sm:$0xff]
    %v86 = vld [vmem:[#allocation7 + $0x40] sm:$0xff]
    %v87 = vld [vmem:[#allocation7 + $0x48] sm:$0xff]
    %v88 = vld [vmem:[#allocation7 + $0x50] sm:$0xff]
    %v89 = vld [vmem:[#allocation7 + $0x58] sm:$0xff]
    %v90 = vld [vmem:[#allocation7 + $0x60] sm:$0xff]
    %v91 = vld [vmem:[#allocation7 + $0x68] sm:$0xff]
    %v92 = vld [vmem:[#allocation7 + $0x70] sm:$0xff]
    %v93 = vld [vmem:[#allocation7 + $0x78] sm:$0xff]
    %v94 = vld [vmem:[#allocation7 + $0x80] sm:$0xff]
    %v95 = vld [vmem:[#allocation7 + $0x88] sm:$0xff]
    %v96 = vld [vmem:[#allocation7 + $0x90] sm:$0xff]
    %v97 = vld [vmem:[#allocation7 + $0x98] sm:$0xff]
    %v98 = vld [vmem:[#allocation7 + $0xa0] sm:$0xff]
    %v99 = vld [vmem:[#allocation7 + $0xa8] sm:$0xff]
    %v100 = vld [vmem:[#allocation7 + $0xb0] sm:$0xff]
    %v101 = vld [vmem:[#allocation7 + $0xb8] sm:$0xff]
    %v102 = vld [vmem:[#allocation7 + $0xc0] sm:$0xff]
    %v103 = vld [vmem:[#allocation7 + $0xc8] sm:$0xff]
    %v104 = vld [vmem:[#allocation7 + $0xd0] sm:$0xff]
    %v105 = vld [vmem:[#allocation7 + $0xd8] sm:$0xff]
    %v106 = vld [vmem:[#allocation7 + $0xe0] sm:$0xff]
    %v107 = vld [vmem:[#allocation7 + $0xe8] sm:$0xff]
    %v108 = vld [vmem:[#allocation7 + $0xf0] sm:$0xff]
    %v109 = vld [vmem:[#allocation7 + $0xf8] sm:$0xff]
    %v110 = vld [vmem:[#allocation2] sm:$0xff]
    %v111 = vld [vmem:[#allocation3] sm:$0xff]
    %v112 = vld [vmem:[#allocation4] sm:$0xff]
    %v113 = vld [vmem:[#allocation4 + $0x8] sm:$0xff]
    %v114 = vunpack.c.l.bf16 %v112
    %v115 = vunpack.c.h.bf16 %v112
    %v116 = vunpack.c.l.bf16 %v113
    %v117 = vunpack.c.h.bf16 %v113
    %v118 = vpack.c.bf16 %v110, %v110
    %v151 = vunpack.c.l.b16 %v78
    %v152 = vunpack.c.h.b16 %v78
    %v153 = vunpack.c.l.b16 %v79
    %v154 = vunpack.c.h.b16 %v79
    %v155 = vunpack.c.l.b16 %v80
    %v156 = vunpack.c.h.b16 %v80
    %v157 = vunpack.c.l.b16 %v81
    %v158 = vunpack.c.h.b16 %v81
    %v159 = vunpack.c.l.b16 %v82
    %v160 = vunpack.c.h.b16 %v82
    %v161 = vunpack.c.l.b16 %v83
    %v162 = vunpack.c.h.b16 %v83
    %v163 = vunpack.c.l.b16 %v84
    %v164 = vunpack.c.h.b16 %v84
    %v165 = vunpack.c.l.b16 %v85
    %v166 = vunpack.c.h.b16 %v85
    %v167 = vunpack.c.l.b16 %v86
    %v168 = vunpack.c.h.b16 %v86
    %v169 = vunpack.c.l.b16 %v87
    %v170 = vunpack.c.h.b16 %v87
    %v171 = vunpack.c.l.b16 %v88
    %v172 = vunpack.c.h.b16 %v88
    %v173 = vunpack.c.l.b16 %v89
    %v174 = vunpack.c.h.b16 %v89
    %v175 = vunpack.c.l.b16 %v90
    %v176 = vunpack.c.h.b16 %v90
    %v177 = vunpack.c.l.b16 %v91
    %v178 = vunpack.c.h.b16 %v91
    %v179 = vunpack.c.l.b16 %v92
    %v180 = vunpack.c.h.b16 %v92
    %v181 = vunpack.c.l.b16 %v93
    %v182 = vunpack.c.h.b16 %v93
    %v183 = vunpack.c.l.b16 %v94
    %v184 = vunpack.c.h.b16 %v94
    %v185 = vunpack.c.l.b16 %v95
    %v186 = vunpack.c.h.b16 %v95
    %v187 = vunpack.c.l.b16 %v96
    %v188 = vunpack.c.h.b16 %v96
    %v189 = vunpack.c.l.b16 %v97
    %v190 = vunpack.c.h.b16 %v97
    %v191 = vunpack.c.l.b16 %v98
    %v192 = vunpack.c.h.b16 %v98
    %v193 = vunpack.c.l.b16 %v99
    %v194 = vunpack.c.h.b16 %v99
    %v195 = vunpack.c.l.b16 %v100
    %v196 = vunpack.c.h.b16 %v100
    %v197 = vunpack.c.l.b16 %v101
    %v198 = vunpack.c.h.b16 %v101
    %v199 = vunpack.c.l.b16 %v102
    %v200 = vunpack.c.h.b16 %v102
    %v201 = vunpack.c.l.b16 %v103
    %v202 = vunpack.c.h.b16 %v103
    %v203 = vunpack.c.l.b16 %v104
    %v204 = vunpack.c.h.b16 %v104
    %v205 = vunpack.c.l.b16 %v105
    %v206 = vunpack.c.h.b16 %v105
    %v207 = vunpack.c.l.b16 %v106
    %v208 = vunpack.c.h.b16 %v106
    %v209 = vunpack.c.l.b16 %v107
    %v210 = vunpack.c.h.b16 %v107
    %v211 = vunpack.c.l.b16 %v108
    %v212 = vunpack.c.h.b16 %v108
    %v213 = vunpack.c.l.b16 %v109
    %v214 = vunpack.c.h.b16 %v109
    %v215 = vpack.c.b16 %v155, %v151
    %v216 = vpack.c.b16 %v156, %v152
    %v217 = vpack.c.b16 %v157, %v153
    %v218 = vpack.c.b16 %v158, %v154
    %v219 = vpack.c.b16 %v163, %v159
    %v220 = vpack.c.b16 %v164, %v160
    %v221 = vpack.c.b16 %v165, %v161
    %v222 = vpack.c.b16 %v166, %v162
    %v223 = vpack.c.b16 %v171, %v167
    %v224 = vpack.c.b16 %v172, %v168
    %v225 = vpack.c.b16 %v173, %v169
    %v226 = vpack.c.b16 %v174, %v170
    %v227 = vpack.c.b16 %v179, %v175
    %v228 = vpack.c.b16 %v180, %v176
    %v229 = vpack.c.b16 %v181, %v177
    %v230 = vpack.c.b16 %v182, %v178
    %v231 = vpack.c.b16 %v187, %v183
    %v232 = vpack.c.b16 %v188, %v184
    %v233 = vpack.c.b16 %v189, %v185
    %v234 = vpack.c.b16 %v190, %v186
    %v235 = vpack.c.b16 %v195, %v191
    %v236 = vpack.c.b16 %v196, %v192
    %v237 = vpack.c.b16 %v197, %v193
    %v238 = vpack.c.b16 %v198, %v194
    %v239 = vpack.c.b16 %v203, %v199
    %v240 = vpack.c.b16 %v204, %v200
    %v241 = vpack.c.b16 %v205, %v201
    %v242 = vpack.c.b16 %v206, %v202
    %v243 = vpack.c.b16 %v211, %v207
    %v244 = vpack.c.b16 %v212, %v208
    %v245 = vpack.c.b16 %v213, %v209
    %v246 = vpack.c.b16 %v214, %v210
    %279 = vmatprep.subr.bf16.mxu0 %v216
    %280 = vmatpush1.bf16.msra.mxu0 %v215
    %281 = vmatprep.subr.bf16.mxu0 %v220
    %282 = vmatpush1.bf16.msra.mxu0 %v219
    %283 = vmatprep.subr.bf16.mxu0 %v224
    %284 = vmatpush1.bf16.msra.mxu0 %v223
    %285 = vmatprep.subr.bf16.mxu0 %v228
    %286 = vmatpush1.bf16.msra.mxu0 %v227
    %287 = vmatprep.subr.bf16.mxu0 %v232
    %288 = vmatpush1.bf16.msra.mxu0 %v231
    %289 = vmatprep.subr.bf16.mxu0 %v236
    %290 = vmatpush1.bf16.msra.mxu0 %v235
    %291 = vmatprep.subr.bf16.mxu0 %v240
    %292 = vmatpush1.bf16.msra.mxu0 %v239
    %293 = vmatprep.subr.bf16.mxu0 %v244
    %294 = vmatpush1.bf16.msra.mxu0 %v243
    %295 = vmatprep.subr.bf16.mxu0 0
    %296 = vmatpush1.bf16.msra.mxu0 0
    %297 = vmatprep.subr.bf16.mxu0 0
    %298 = vmatpush1.bf16.msra.mxu0 0
    %299 = vmatprep.subr.bf16.mxu0 0
    %300 = vmatpush1.bf16.msra.mxu0 0
    %301 = vmatprep.subr.bf16.mxu0 0
    %302 = vmatpush1.bf16.msra.mxu0 0
    %303 = vmatprep.subr.bf16.mxu0 0
    %304 = vmatpush1.bf16.msra.mxu0 0
    %305 = vmatprep.subr.bf16.mxu0 0
    %306 = vmatpush1.bf16.msra.mxu0 0
    %307 = vmatprep.subr.bf16.mxu0 0
    %308 = vmatpush1.bf16.msra.mxu0 0
    %309 = vmatprep.subr.bf16.mxu0 0
    %310 = vmatpush1.bf16.msra.mxu0 0
    %311 = vmatprep.mubr.bf16.mxu0 0
    %312 = vmatmul.mubr.bf16.gmra.mrb[0].mxu0 %v118
    %v313 = vpop.f32.mrb[0].mxu0
    %v314 = vadd.f32 %v114, %v313
    %v315 = vpop.f32.mrb[0].mxu0
    %v316 = vadd.f32 %v115, %v315
    %v317 = vpop.f32.mrb[0].mxu0
    %v318 = vpop.f32.mrb[0].mxu0
    %319 = vdwg.mxu0
    %320 = vmatprep.subr.bf16.mxu0 %v218
    %321 = vmatpush1.bf16.msra.mxu0 %v217
    %322 = vmatprep.subr.bf16.mxu0 %v222
    %323 = vmatpush1.bf16.msra.mxu0 %v221
    %324 = vmatprep.subr.bf16.mxu0 %v226
    %325 = vmatpush1.bf16.msra.mxu0 %v225
    %326 = vmatprep.subr.bf16.mxu0 %v230
    %327 = vmatpush1.bf16.msra.mxu0 %v229
    %328 = vmatprep.subr.bf16.mxu0 %v234
    %329 = vmatpush1.bf16.msra.mxu0 %v233
    %330 = vmatprep.subr.bf16.mxu0 %v238
    %331 = vmatpush1.bf16.msra.mxu0 %v237
    %332 = vmatprep.subr.bf16.mxu0 %v242
    %333 = vmatpush1.bf16.msra.mxu0 %v241
    %334 = vmatprep.subr.bf16.mxu0 %v246
    %335 = vmatpush1.bf16.msra.mxu0 %v245
    %336 = vmatprep.subr.bf16.mxu0 0
    %337 = vmatpush1.bf16.msra.mxu0 0
    %338 = vmatprep.subr.bf16.mxu0 0
    %339 = vmatpush1.bf16.msra.mxu0 0
    %340 = vmatprep.subr.bf16.mxu0 0
    %341 = vmatpush1.bf16.msra.mxu0 0
    %342 = vmatprep.subr.bf16.mxu0 0
    %343 = vmatpush1.bf16.msra.mxu0 0
    %344 = vmatprep.subr.bf16.mxu0 0
    %345 = vmatpush1.bf16.msra.mxu0 0
    %346 = vmatprep.subr.bf16.mxu0 0
    %347 = vmatpush1.bf16.msra.mxu0 0
    %348 = vmatprep.subr.bf16.mxu0 0
    %349 = vmatpush1.bf16.msra.mxu0 0
    %350 = vmatprep.subr.bf16.mxu0 0
    %351 = vmatpush1.bf16.msra.mxu0 0
    %352 = vmatprep.mubr.bf16.mxu0 0
    %353 = vmatmul.mubr.bf16.gmra.mrb[0].mxu0 %v118
    %v354 = vpop.f32.mrb[0].mxu0
    %v355 = vadd.f32 %v116, %v354
    %v356 = vpop.f32.mrb[0].mxu0
    %v357 = vadd.f32 %v117, %v356
    %v358 = vpop.f32.mrb[0].mxu0
    %v359 = vpop.f32.mrb[0].mxu0
    %360 = vdwg.mxu0
    %v361 = vxor.u32 %v314, 2147483648
    %v362 = vmul.f32 %v361, 1.442695
    %v363 = vpow.pop %v362
    %v364 = vadd.f32 %v363, 1.0
    %v365 = vrcp.pop %v364
    %v366 = vmul.f32 1.0, %v365
    %v367 = vxor.u32 %v316, 2147483648
    %v368 = vmul.f32 %v367, 1.442695
    %v369 = vpow.pop %v368
    %v370 = vadd.f32 %v369, 1.0
    %v371 = vrcp.pop %v370
    %v372 = vmul.f32 1.0, %v371
    %v373 = vtanh.pop %v355
    %v374 = vxor.u32 %v357, 2147483648
    %v375 = vmul.f32 %v374, 1.442695
    %v376 = vpow.pop %v375
    %v377 = vadd.f32 %v376, 1.0
    %v378 = vrcp.pop %v377
    %v379 = vmul.f32 1.0, %v378
    %v380 = vmul.f32 %v372, %v111
    %v381 = vmul.f32 %v366, %v373
    %v382 = vadd.f32 %v380, %v381
    %v383 = vtanh.pop %v382
    %v384 = vmul.f32 %v379, %v383
    %v386 = vlaneseq
    %v387 = vshrl.u32 %v386, 7
    %v388 = vsub.s32 0, %v387
    %v389 = vrot.slane %v76, %v388
    %v391 = vmul.f32 %v384, %v389
    %v393 = vlaneseq
    %v394 = vshrl.u32 %v393, 7
    %v395 = vsub.s32 0, %v394
    %v396 = vrot.slane %v77, %v395
    %v398 = vadd.f32 %v391, %v396
    %399 = vst [vmem:[#allocation10] sm:$0xff] %v398
    %s400 = scalar_lea.vmem [#allocation4], 16
    %v401 = vld [vmem:[%s400] sm:$0xff]
    %v402 = vld [vmem:[%s400 + $0x8] sm:$0xff]
    %v403 = vunpack.c.l.bf16 %v401
    %v404 = vunpack.c.h.bf16 %v401
    %v405 = vunpack.c.l.bf16 %v402
    %v406 = vunpack.c.h.bf16 %v402
    %v407 = vpack.c.bf16 %v384, %v384
    %408 = vmatprep.subr.bf16.mxu0 %v216
    %409 = vmatpush1.bf16.msra.mxu0 %v215
    %410 = vmatprep.subr.bf16.mxu0 %v220
    %411 = vmatpush1.bf16.msra.mxu0 %v219
    %412 = vmatprep.subr.bf16.mxu0 %v224
    %413 = vmatpush1.bf16.msra.mxu0 %v223
    %414 = vmatprep.subr.bf16.mxu0 %v228
    %415 = vmatpush1.bf16.msra.mxu0 %v227
    %416 = vmatprep.subr.bf16.mxu0 %v232
    %417 = vmatpush1.bf16.msra.mxu0 %v231
    %418 = vmatprep.subr.bf16.mxu0 %v236
    %419 = vmatpush1.bf16.msra.mxu0 %v235
    %420 = vmatprep.subr.bf16.mxu0 %v240
    %421 = vmatpush1.bf16.msra.mxu0 %v239
    %422 = vmatprep.subr.bf16.mxu0 %v244
    %423 = vmatpush1.bf16.msra.mxu0 %v243
    %424 = vmatprep.subr.bf16.mxu0 0
    %425 = vmatpush1.bf16.msra.mxu0 0
    %426 = vmatprep.subr.bf16.mxu0 0
    %427 = vmatpush1.bf16.msra.mxu0 0
    %428 = vmatprep.subr.bf16.mxu0 0
    %429 = vmatpush1.bf16.msra.mxu0 0
    %430 = vmatprep.subr.bf16.mxu0 0
    %431 = vmatpush1.bf16.msra.mxu0 0
    %432 = vmatprep.subr.bf16.mxu0 0
    %433 = vmatpush1.bf16.msra.mxu0 0
    %434 = vmatprep.subr.bf16.mxu0 0
    %435 = vmatpush1.bf16.msra.mxu0 0
    %436 = vmatprep.subr.bf16.mxu0 0
    %437 = vmatpush1.bf16.msra.mxu0 0
    %438 = vmatprep.subr.bf16.mxu0 0
    %439 = vmatpush1.bf16.msra.mxu0 0
    %440 = vmatprep.mubr.bf16.mxu0 0
    %441 = vmatmul.mubr.bf16.gmra.mrb[0].mxu0 %v407
    %v442 = vpop.f32.mrb[0].mxu0
    %v443 = vadd.f32 %v403, %v442
    %v444 = vpop.f32.mrb[0].mxu0
    %v445 = vadd.f32 %v404, %v444
    %v446 = vpop.f32.mrb[0].mxu0
    %v447 = vpop.f32.mrb[0].mxu0
    %448 = vdwg.mxu0
    %449 = vmatprep.subr.bf16.mxu0 %v218
    %450 = vmatpush1.bf16.msra.mxu0 %v217
    %451 = vmatprep.subr.bf16.mxu0 %v222
    %452 = vmatpush1.bf16.msra.mxu0 %v221
    %453 = vmatprep.subr.bf16.mxu0 %v226
    %454 = vmatpush1.bf16.msra.mxu0 %v225
    %455 = vmatprep.subr.bf16.mxu0 %v230
    %456 = vmatpush1.bf16.msra.mxu0 %v229
    %457 = vmatprep.subr.bf16.mxu0 %v234
    %458 = vmatpush1.bf16.msra.mxu0 %v233
    %459 = vmatprep.subr.bf16.mxu0 %v238
    %460 = vmatpush1.bf16.msra.mxu0 %v237
    %461 = vmatprep.subr.bf16.mxu0 %v242
    %462 = vmatpush1.bf16.msra.mxu0 %v241
    %463 = vmatprep.subr.bf16.mxu0 %v246
    %464 = vmatpush1.bf16.msra.mxu0 %v245
    %465 = vmatprep.subr.bf16.mxu0 0
    %466 = vmatpush1.bf16.msra.mxu0 0
    %467 = vmatprep.subr.bf16.mxu0 0
    %468 = vmatpush1.bf16.msra.mxu0 0
    %469 = vmatprep.subr.bf16.mxu0 0
    %470 = vmatpush1.bf16.msra.mxu0 0
    %471 = vmatprep.subr.bf16.mxu0 0
    %472 = vmatpush1.bf16.msra.mxu0 0
    %473 = vmatprep.subr.bf16.mxu0 0
    %474 = vmatpush1.bf16.msra.mxu0 0
    %475 = vmatprep.subr.bf16.mxu0 0
    %476 = vmatpush1.bf16.msra.mxu0 0
    %477 = vmatprep.subr.bf16.mxu0 0
    %478 = vmatpush1.bf16.msra.mxu0 0
    %479 = vmatprep.subr.bf16.mxu0 0
    %480 = vmatpush1.bf16.msra.mxu0 0
    %481 = vmatprep.mubr.bf16.mxu0 0
    %482 = vmatmul.mubr.bf16.gmra.mrb[0].mxu0 %v407
    %v483 = vpop.f32.mrb[0].mxu0
    %v484 = vadd.f32 %v405, %v483
    %v485 = vpop.f32.mrb[0].mxu0
    %v486 = vadd.f32 %v406, %v485
    %v487 = vpop.f32.mrb[0].mxu0
    %v488 = vpop.f32.mrb[0].mxu0
    %489 = vdwg.mxu0
    %v490 = vxor.u32 %v443, 2147483648
    %v491 = vmul.f32 %v490, 1.442695
    %v492 = vpow.pop %v491
    %v493 = vadd.f32 %v492, 1.0
    %v494 = vrcp.pop %v493
    %v495 = vmul.f32 1.0, %v494
    %v496 = vxor.u32 %v445, 2147483648
    %v497 = vmul.f32 %v496, 1.442695
    %v498 = vpow.pop %v497
    %v499 = vadd.f32 %v498, 1.0
    %v500 = vrcp.pop %v499
    %v501 = vmul.f32 1.0, %v500
    %v502 = vtanh.pop %v484
    %v503 = vxor.u32 %v486, 2147483648
    %v504 = vmul.f32 %v503, 1.442695
    %v505 = vpow.pop %v504
    %v506 = vadd.f32 %v505, 1.0
    %v507 = vrcp.pop %v506
    %v508 = vmul.f32 1.0, %v507
    %v509 = vmul.f32 %v501, %v382
    %v510 = vmul.f32 %v495, %v502
    %v511 = vadd.f32 %v509, %v510
    %v512 = vtanh.pop %v511
    %v513 = vmul.f32 %v508, %v512
    %v514 = vmul.f32 %v513, %v389
    %v515 = vadd.f32 %v514, %v396
    %s516 = scalar_lea.vmem [#allocation10], 8
    %517 = vst [vmem:[%s516] sm:$0xff] %v515
    %s518 = scalar_lea.vmem [#allocation4], 32
    %v519 = vld [vmem:[%s518] sm:$0xff]
    %v520 = vld [vmem:[%s518 + $0x8] sm:$0xff]
    %v521 = vunpack.c.l.bf16 %v519
    %v522 = vunpack.c.h.bf16 %v519
    %v523 = vunpack.c.l.bf16 %v520
    %v524 = vunpack.c.h.bf16 %v520
    %v525 = vpack.c.bf16 %v513, %v513
    %526 = vmatprep.subr.bf16.mxu0 %v216
    %527 = vmatpush1.bf16.msra.mxu0 %v215
    %528 = vmatprep.subr.bf16.mxu0 %v220
    %529 = vmatpush1.bf16.msra.mxu0 %v219
    %530 = vmatprep.subr.bf16.mxu0 %v224
    %531 = vmatpush1.bf16.msra.mxu0 %v223
    %532 = vmatprep.subr.bf16.mxu0 %v228
    %533 = vmatpush1.bf16.msra.mxu0 %v227
    %534 = vmatprep.subr.bf16.mxu0 %v232
    %535 = vmatpush1.bf16.msra.mxu0 %v231
    %536 = vmatprep.subr.bf16.mxu0 %v236
    %537 = vmatpush1.bf16.msra.mxu0 %v235
    %538 = vmatprep.subr.bf16.mxu0 %v240
    %539 = vmatpush1.bf16.msra.mxu0 %v239
    %540 = vmatprep.subr.bf16.mxu0 %v244
    %541 = vmatpush1.bf16.msra.mxu0 %v243
    %542 = vmatprep.subr.bf16.mxu0 0
    %543 = vmatpush1.bf16.msra.mxu0 0
    %544 = vmatprep.subr.bf16.mxu0 0
    %545 = vmatpush1.bf16.msra.mxu0 0
    %546 = vmatprep.subr.bf16.mxu0 0
    %547 = vmatpush1.bf16.msra.mxu0 0
    %548 = vmatprep.subr.bf16.mxu0 0
    %549 = vmatpush1.bf16.msra.mxu0 0
    %550 = vmatprep.subr.bf16.mxu0 0
    %551 = vmatpush1.bf16.msra.mxu0 0
    %552 = vmatprep.subr.bf16.mxu0 0
    %553 = vmatpush1.bf16.msra.mxu0 0
    %554 = vmatprep.subr.bf16.mxu0 0
    %555 = vmatpush1.bf16.msra.mxu0 0
    %556 = vmatprep.subr.bf16.mxu0 0
    %557 = vmatpush1.bf16.msra.mxu0 0
    %558 = vmatprep.mubr.bf16.mxu0 0
    %559 = vmatmul.mubr.bf16.gmra.mrb[0].mxu0 %v525
    %v560 = vpop.f32.mrb[0].mxu0
    %v561 = vadd.f32 %v521, %v560
    %v562 = vpop.f32.mrb[0].mxu0
    %v563 = vadd.f32 %v522, %v562
    %v564 = vpop.f32.mrb[0].mxu0
    %v565 = vpop.f32.mrb[0].mxu0
    %566 = vdwg.mxu0
    %567 = vmatprep.subr.bf16.mxu0 %v218
    %568 = vmatpush1.bf16.msra.mxu0 %v217
    %569 = vmatprep.subr.bf16.mxu0 %v222
    %570 = vmatpush1.bf16.msra.mxu0 %v221
    %571 = vmatprep.subr.bf16.mxu0 %v226
    %572 = vmatpush1.bf16.msra.mxu0 %v225
    %573 = vmatprep.subr.bf16.mxu0 %v230
    %574 = vmatpush1.bf16.msra.mxu0 %v229
    %575 = vmatprep.subr.bf16.mxu0 %v234
    %576 = vmatpush1.bf16.msra.mxu0 %v233
    %577 = vmatprep.subr.bf16.mxu0 %v238
    %578 = vmatpush1.bf16.msra.mxu0 %v237
    %579 = vmatprep.subr.bf16.mxu0 %v242
    %580 = vmatpush1.bf16.msra.mxu0 %v241
    %581 = vmatprep.subr.bf16.mxu0 %v246
    %582 = vmatpush1.bf16.msra.mxu0 %v245
    %583 = vmatprep.subr.bf16.mxu0 0
    %584 = vmatpush1.bf16.msra.mxu0 0
    %585 = vmatprep.subr.bf16.mxu0 0
    %586 = vmatpush1.bf16.msra.mxu0 0
    %587 = vmatprep.subr.bf16.mxu0 0
    %588 = vmatpush1.bf16.msra.mxu0 0
    %589 = vmatprep.subr.bf16.mxu0 0
    %590 = vmatpush1.bf16.msra.mxu0 0
    %591 = vmatprep.subr.bf16.mxu0 0
    %592 = vmatpush1.bf16.msra.mxu0 0
    %593 = vmatprep.subr.bf16.mxu0 0
    %594 = vmatpush1.bf16.msra.mxu0 0
    %595 = vmatprep.subr.bf16.mxu0 0
    %596 = vmatpush1.bf16.msra.mxu0 0
    %597 = vmatprep.subr.bf16.mxu0 0
    %598 = vmatpush1.bf16.msra.mxu0 0
    %599 = vmatprep.mubr.bf16.mxu0 0
    %600 = vmatmul.mubr.bf16.gmra.mrb[0].mxu0 %v525
    %v601 = vpop.f32.mrb[0].mxu0
    %v602 = vadd.f32 %v523, %v601
    %v603 = vpop.f32.mrb[0].mxu0
    %v604 = vadd.f32 %v524, %v603
    %v605 = vpop.f32.mrb[0].mxu0
    %v606 = vpop.f32.mrb[0].mxu0
    %607 = vdwg.mxu0
    %v608 = vxor.u32 %v561, 2147483648
    %v609 = vmul.f32 %v608, 1.442695
    %v610 = vpow.pop %v609
    %v611 = vadd.f32 %v610, 1.0
    %v612 = vrcp.pop %v611
    %v613 = vmul.f32 1.0, %v612
    %v614 = vxor.u32 %v563, 2147483648
    %v615 = vmul.f32 %v614, 1.442695
    %v616 = vpow.pop %v615
    %v617 = vadd.f32 %v616, 1.0
    %v618 = vrcp.pop %v617
    %v619 = vmul.f32 1.0, %v618
    %v620 = vtanh.pop %v602
    %v621 = vxor.u32 %v604, 2147483648
    %v622 = vmul.f32 %v621, 1.442695
    %v623 = vpow.pop %v622
    %v624 = vadd.f32 %v623, 1.0
    %v625 = vrcp.pop %v624
    %v626 = vmul.f32 1.0, %v625
    %v627 = vmul.f32 %v619, %v511
    %v628 = vmul.f32 %v613, %v620
    %v629 = vadd.f32 %v627, %v628
    %v630 = vtanh.pop %v629
    %v631 = vmul.f32 %v626, %v630
    %v632 = vmul.f32 %v631, %v389
    %v633 = vadd.f32 %v632, %v396
    %s634 = scalar_lea.vmem [#allocation10], 16
    %635 = vst [vmem:[%s634] sm:$0xff] %v633
    %s636 = scalar_lea.vmem [#allocation4], 48
    %v637 = vld [vmem:[%s636] sm:$0xff]
    %v638 = vld [vmem:[%s636 + $0x8] sm:$0xff]
    %v639 = vunpack.c.l.bf16 %v637
    %v640 = vunpack.c.h.bf16 %v637
    %v641 = vunpack.c.l.bf16 %v638
    %v642 = vunpack.c.h.bf16 %v638
    %v643 = vpack.c.bf16 %v631, %v631
    %644 = vmatprep.subr.bf16.mxu0 %v216
    %645 = vmatpush1.bf16.msra.mxu0 %v215
    %646 = vmatprep.subr.bf16.mxu0 %v220
    %647 = vmatpush1.bf16.msra.mxu0 %v219
    %648 = vmatprep.subr.bf16.mxu0 %v224
    %649 = vmatpush1.bf16.msra.mxu0 %v223
    %650 = vmatprep.subr.bf16.mxu0 %v228
    %651 = vmatpush1.bf16.msra.mxu0 %v227
    %652 = vmatprep.subr.bf16.mxu0 %v232
    %653 = vmatpush1.bf16.msra.mxu0 %v231
    %654 = vmatprep.subr.bf16.mxu0 %v236
    %655 = vmatpush1.bf16.msra.mxu0 %v235
    %656 = vmatprep.subr.bf16.mxu0 %v240
    %657 = vmatpush1.bf16.msra.mxu0 %v239
    %658 = vmatprep.subr.bf16.mxu0 %v244
    %659 = vmatpush1.bf16.msra.mxu0 %v243
    %660 = vmatprep.subr.bf16.mxu0 0
    %661 = vmatpush1.bf16.msra.mxu0 0
    %662 = vmatprep.subr.bf16.mxu0 0
    %663 = vmatpush1.bf16.msra.mxu0 0
    %664 = vmatprep.subr.bf16.mxu0 0
    %665 = vmatpush1.bf16.msra.mxu0 0
    %666 = vmatprep.subr.bf16.mxu0 0
    %667 = vmatpush1.bf16.msra.mxu0 0
    %668 = vmatprep.subr.bf16.mxu0 0
    %669 = vmatpush1.bf16.msra.mxu0 0
    %670 = vmatprep.subr.bf16.mxu0 0
    %671 = vmatpush1.bf16.msra.mxu0 0
    %672 = vmatprep.subr.bf16.mxu0 0
    %673 = vmatpush1.bf16.msra.mxu0 0
    %674 = vmatprep.subr.bf16.mxu0 0
    %675 = vmatpush1.bf16.msra.mxu0 0
    %676 = vmatprep.mubr.bf16.mxu0 0
    %677 = vmatmul.mubr.bf16.gmra.mrb[0].mxu0 %v643
    %v678 = vpop.f32.mrb[0].mxu0
    %v679 = vadd.f32 %v639, %v678
    %v680 = vpop.f32.mrb[0].mxu0
    %v681 = vadd.f32 %v640, %v680
    %v682 = vpop.f32.mrb[0].mxu0
    %v683 = vpop.f32.mrb[0].mxu0
    %684 = vdwg.mxu0
    %685 = vmatprep.subr.bf16.mxu0 %v218
    %686 = vmatpush1.bf16.msra.mxu0 %v217
    %687 = vmatprep.subr.bf16.mxu0 %v222
    %688 = vmatpush1.bf16.msra.mxu0 %v221
    %689 = vmatprep.subr.bf16.mxu0 %v226
    %690 = vmatpush1.bf16.msra.mxu0 %v225
    %691 = vmatprep.subr.bf16.mxu0 %v230
    %692 = vmatpush1.bf16.msra.mxu0 %v229
    %693 = vmatprep.subr.bf16.mxu0 %v234
    %694 = vmatpush1.bf16.msra.mxu0 %v233
    %695 = vmatprep.subr.bf16.mxu0 %v238
    %696 = vmatpush1.bf16.msra.mxu0 %v237
    %697 = vmatprep.subr.bf16.mxu0 %v242
    %698 = vmatpush1.bf16.msra.mxu0 %v241
    %699 = vmatprep.subr.bf16.mxu0 %v246
    %700 = vmatpush1.bf16.msra.mxu0 %v245
    %701 = vmatprep.subr.bf16.mxu0 0
    %702 = vmatpush1.bf16.msra.mxu0 0
    %703 = vmatprep.subr.bf16.mxu0 0
    %704 = vmatpush1.bf16.msra.mxu0 0
    %705 = vmatprep.subr.bf16.mxu0 0
    %706 = vmatpush1.bf16.msra.mxu0 0
    %707 = vmatprep.subr.bf16.mxu0 0
    %708 = vmatpush1.bf16.msra.mxu0 0
    %709 = vmatprep.subr.bf16.mxu0 0
    %710 = vmatpush1.bf16.msra.mxu0 0
    %711 = vmatprep.subr.bf16.mxu0 0
    %712 = vmatpush1.bf16.msra.mxu0 0
    %713 = vmatprep.subr.bf16.mxu0 0
    %714 = vmatpush1.bf16.msra.mxu0 0
    %715 = vmatprep.subr.bf16.mxu0 0
    %716 = vmatpush1.bf16.msra.mxu0 0
    %717 = vmatprep.mubr.bf16.mxu0 0
    %718 = vmatmul.mubr.bf16.gmra.mrb[0].mxu0 %v643
    %v719 = vpop.f32.mrb[0].mxu0
    %v720 = vadd.f32 %v641, %v719
    %v721 = vpop.f32.mrb[0].mxu0
    %v722 = vadd.f32 %v642, %v721
    %v723 = vpop.f32.mrb[0].mxu0
    %v724 = vpop.f32.mrb[0].mxu0
    %725 = vdwg.mxu0
    %v726 = vxor.u32 %v679, 2147483648
    %v727 = vmul.f32 %v726, 1.442695
    %v728 = vpow.pop %v727
    %v729 = vadd.f32 %v728, 1.0
    %v730 = vrcp.pop %v729
    %v731 = vmul.f32 1.0, %v730
    %v732 = vxor.u32 %v681, 2147483648
    %v733 = vmul.f32 %v732, 1.442695
    %v734 = vpow.pop %v733
    %v735 = vadd.f32 %v734, 1.0
    %v736 = vrcp.pop %v735
    %v737 = vmul.f32 1.0, %v736
    %v738 = vtanh.pop %v720
    %v739 = vxor.u32 %v722, 2147483648
    %v740 = vmul.f32 %v739, 1.442695
    %v741 = vpow.pop %v740
    %v742 = vadd.f32 %v741, 1.0
    %v743 = vrcp.pop %v742
    %v744 = vmul.f32 1.0, %v743
    %v745 = vmul.f32 %v737, %v629
    %v746 = vmul.f32 %v731, %v738
    %v747 = vadd.f32 %v745, %v746
    %v748 = vtanh.pop %v747
    %v749 = vmul.f32 %v744, %v748
    %v750 = vmul.f32 %v749, %v389
    %v751 = vadd.f32 %v750, %v396
    %s752 = scalar_lea.vmem [#allocation10], 24
    %753 = vst [vmem:[%s752] sm:$0xff] %v751
    %s754 = scalar_lea.vmem [#allocation4], 64
    %v755 = vld [vmem:[%s754] sm:$0xff]
    %v756 = vld [vmem:[%s754 + $0x8] sm:$0xff]
    %v757 = vunpack.c.l.bf16 %v755
    %v758 = vunpack.c.h.bf16 %v755
    %v759 = vunpack.c.l.bf16 %v756
    %v760 = vunpack.c.h.bf16 %v756
    %v761 = vpack.c.bf16 %v749, %v749
    %762 = vmatprep.subr.bf16.mxu0 %v216
    %763 = vmatpush1.bf16.msra.mxu0 %v215
    %764 = vmatprep.subr.bf16.mxu0 %v220
    %765 = vmatpush1.bf16.msra.mxu0 %v219
    %766 = vmatprep.subr.bf16.mxu0 %v224
    %767 = vmatpush1.bf16.msra.mxu0 %v223
    %768 = vmatprep.subr.bf16.mxu0 %v228
    %769 = vmatpush1.bf16.msra.mxu0 %v227
    %770 = vmatprep.subr.bf16.mxu0 %v232
    %771 = vmatpush1.bf16.msra.mxu0 %v231
    %772 = vmatprep.subr.bf16.mxu0 %v236
    %773 = vmatpush1.bf16.msra.mxu0 %v235
    %774 = vmatprep.subr.bf16.mxu0 %v240
    %775 = vmatpush1.bf16.msra.mxu0 %v239
    %776 = vmatprep.subr.bf16.mxu0 %v244
    %777 = vmatpush1.bf16.msra.mxu0 %v243
    %778 = vmatprep.subr.bf16.mxu0 0
    %779 = vmatpush1.bf16.msra.mxu0 0
    %780 = vmatprep.subr.bf16.mxu0 0
    %781 = vmatpush1.bf16.msra.mxu0 0
    %782 = vmatprep.subr.bf16.mxu0 0
    %783 = vmatpush1.bf16.msra.mxu0 0
    %784 = vmatprep.subr.bf16.mxu0 0
    %785 = vmatpush1.bf16.msra.mxu0 0
    %786 = vmatprep.subr.bf16.mxu0 0
    %787 = vmatpush1.bf16.msra.mxu0 0
    %788 = vmatprep.subr.bf16.mxu0 0
    %789 = vmatpush1.bf16.msra.mxu0 0
    %790 = vmatprep.subr.bf16.mxu0 0
    %791 = vmatpush1.bf16.msra.mxu0 0
    %792 = vmatprep.subr.bf16.mxu0 0
    %793 = vmatpush1.bf16.msra.mxu0 0
    %794 = vmatprep.mubr.bf16.mxu0 0
    %795 = vmatmul.mubr.bf16.gmra.mrb[0].mxu0 %v761
    %v796 = vpop.f32.mrb[0].mxu0
    %v797 = vadd.f32 %v757, %v796
    %v798 = vpop.f32.mrb[0].mxu0
    %v799 = vadd.f32 %v758, %v798
    %v800 = vpop.f32.mrb[0].mxu0
    %v801 = vpop.f32.mrb[0].mxu0
    %802 = vdwg.mxu0
    %803 = vmatprep.subr.bf16.mxu0 %v218
    %804 = vmatpush1.bf16.msra.mxu0 %v217
    %805 = vmatprep.subr.bf16.mxu0 %v222
    %806 = vmatpush1.bf16.msra.mxu0 %v221
    %807 = vmatprep.subr.bf16.mxu0 %v226
    %808 = vmatpush1.bf16.msra.mxu0 %v225
    %809 = vmatprep.subr.bf16.mxu0 %v230
    %810 = vmatpush1.bf16.msra.mxu0 %v229
    %811 = vmatprep.subr.bf16.mxu0 %v234
    %812 = vmatpush1.bf16.msra.mxu0 %v233
    %813 = vmatprep.subr.bf16.mxu0 %v238
    %814 = vmatpush1.bf16.msra.mxu0 %v237
    %815 = vmatprep.subr.bf16.mxu0 %v242
    %816 = vmatpush1.bf16.msra.mxu0 %v241
    %817 = vmatprep.subr.bf16.mxu0 %v246
    %818 = vmatpush1.bf16.msra.mxu0 %v245
    %819 = vmatprep.subr.bf16.mxu0 0
    %820 = vmatpush1.bf16.msra.mxu0 0
    %821 = vmatprep.subr.bf16.mxu0 0
    %822 = vmatpush1.bf16.msra.mxu0 0
    %823 = vmatprep.subr.bf16.mxu0 0
    %824 = vmatpush1.bf16.msra.mxu0 0
    %825 = vmatprep.subr.bf16.mxu0 0
    %826 = vmatpush1.bf16.msra.mxu0 0
    %827 = vmatprep.subr.bf16.mxu0 0
    %828 = vmatpush1.bf16.msra.mxu0 0
    %829 = vmatprep.subr.bf16.mxu0 0
    %830 = vmatpush1.bf16.msra.mxu0 0
    %831 = vmatprep.subr.bf16.mxu0 0
    %832 = vmatpush1.bf16.msra.mxu0 0
    %833 = vmatprep.subr.bf16.mxu0 0
    %834 = vmatpush1.bf16.msra.mxu0 0
    %835 = vmatprep.mubr.bf16.mxu0 0
    %836 = vmatmul.mubr.bf16.gmra.mrb[0].mxu0 %v761
    %v837 = vpop.f32.mrb[0].mxu0
    %v838 = vadd.f32 %v759, %v837
    %v839 = vpop.f32.mrb[0].mxu0
    %v840 = vadd.f32 %v760, %v839
    %v841 = vpop.f32.mrb[0].mxu0
    %v842 = vpop.f32.mrb[0].mxu0
    %843 = vdwg.mxu0
    %v844 = vxor.u32 %v797, 2147483648
    %v845 = vmul.f32 %v844, 1.442695
    %v846 = vpow.pop %v845
    %v847 = vadd.f32 %v846, 1.0
    %v848 = vrcp.pop %v847
    %v849 = vmul.f32 1.0, %v848
    %v850 = vxor.u32 %v799, 2147483648
    %v851 = vmul.f32 %v850, 1.442695
    %v852 = vpow.pop %v851
    %v853 = vadd.f32 %v852, 1.0
    %v854 = vrcp.pop %v853
    %v855 = vmul.f32 1.0, %v854
    %v856 = vtanh.pop %v838
    %v857 = vxor.u32 %v840, 2147483648
    %v858 = vmul.f32 %v857, 1.442695
    %v859 = vpow.pop %v858
    %v860 = vadd.f32 %v859, 1.0
    %v861 = vrcp.pop %v860
    %v862 = vmul.f32 1.0, %v861
    %v863 = vmul.f32 %v855, %v747
    %v864 = vmul.f32 %v849, %v856
    %v865 = vadd.f32 %v863, %v864
    %v866 = vtanh.pop %v865
    %v867 = vmul.f32 %v862, %v866
    %v868 = vmul.f32 %v867, %v389
    %v869 = vadd.f32 %v868, %v396
    %s870 = scalar_lea.vmem [#allocation10], 32
    %871 = vst [vmem:[%s870] sm:$0xff] %v869
    %s872 = scalar_lea.vmem [#allocation4], 80
    %v873 = vld [vmem:[%s872] sm:$0xff]
    %v874 = vld [vmem:[%s872 + $0x8] sm:$0xff]
    %v875 = vunpack.c.l.bf16 %v873
    %v876 = vunpack.c.h.bf16 %v873
    %v877 = vunpack.c.l.bf16 %v874
    %v878 = vunpack.c.h.bf16 %v874
    %v879 = vpack.c.bf16 %v867, %v867
    %880 = vmatprep.subr.bf16.mxu0 %v216
    %881 = vmatpush1.bf16.msra.mxu0 %v215
    %882 = vmatprep.subr.bf16.mxu0 %v220
    %883 = vmatpush1.bf16.msra.mxu0 %v219
    %884 = vmatprep.subr.bf16.mxu0 %v224
    %885 = vmatpush1.bf16.msra.mxu0 %v223
    %886 = vmatprep.subr.bf16.mxu0 %v228
    %887 = vmatpush1.bf16.msra.mxu0 %v227
    %888 = vmatprep.subr.bf16.mxu0 %v232
    %889 = vmatpush1.bf16.msra.mxu0 %v231
    %890 = vmatprep.subr.bf16.mxu0 %v236
    %891 = vmatpush1.bf16.msra.mxu0 %v235
    %892 = vmatprep.subr.bf16.mxu0 %v240
    %893 = vmatpush1.bf16.msra.mxu0 %v239
    %894 = vmatprep.subr.bf16.mxu0 %v244
    %895 = vmatpush1.bf16.msra.mxu0 %v243
    %896 = vmatprep.subr.bf16.mxu0 0
    %897 = vmatpush1.bf16.msra.mxu0 0
    %898 = vmatprep.subr.bf16.mxu0 0
    %899 = vmatpush1.bf16.msra.mxu0 0
    %900 = vmatprep.subr.bf16.mxu0 0
    %901 = vmatpush1.bf16.msra.mxu0 0
    %902 = vmatprep.subr.bf16.mxu0 0
    %903 = vmatpush1.bf16.msra.mxu0 0
    %904 = vmatprep.subr.bf16.mxu0 0
    %905 = vmatpush1.bf16.msra.mxu0 0
    %906 = vmatprep.subr.bf16.mxu0 0
    %907 = vmatpush1.bf16.msra.mxu0 0
    %908 = vmatprep.subr.bf16.mxu0 0
    %909 = vmatpush1.bf16.msra.mxu0 0
    %910 = vmatprep.subr.bf16.mxu0 0
    %911 = vmatpush1.bf16.msra.mxu0 0
    %912 = vmatprep.mubr.bf16.mxu0 0
    %913 = vmatmul.mubr.bf16.gmra.mrb[0].mxu0 %v879
    %v914 = vpop.f32.mrb[0].mxu0
    %v915 = vadd.f32 %v875, %v914
    %v916 = vpop.f32.mrb[0].mxu0
    %v917 = vadd.f32 %v876, %v916
    %v918 = vpop.f32.mrb[0].mxu0
    %v919 = vpop.f32.mrb[0].mxu0
    %920 = vdwg.mxu0
    %921 = vmatprep.subr.bf16.mxu0 %v218
    %922 = vmatpush1.bf16.msra.mxu0 %v217
    %923 = vmatprep.subr.bf16.mxu0 %v222
    %924 = vmatpush1.bf16.msra.mxu0 %v221
    %925 = vmatprep.subr.bf16.mxu0 %v226
    %926 = vmatpush1.bf16.msra.mxu0 %v225
    %927 = vmatprep.subr.bf16.mxu0 %v230
    %928 = vmatpush1.bf16.msra.mxu0 %v229
    %929 = vmatprep.subr.bf16.mxu0 %v234
    %930 = vmatpush1.bf16.msra.mxu0 %v233
    %931 = vmatprep.subr.bf16.mxu0 %v238
    %932 = vmatpush1.bf16.msra.mxu0 %v237
    %933 = vmatprep.subr.bf16.mxu0 %v242
    %934 = vmatpush1.bf16.msra.mxu0 %v241
    %935 = vmatprep.subr.bf16.mxu0 %v246
    %936 = vmatpush1.bf16.msra.mxu0 %v245
    %937 = vmatprep.subr.bf16.mxu0 0
    %938 = vmatpush1.bf16.msra.mxu0 0
    %939 = vmatprep.subr.bf16.mxu0 0
    %940 = vmatpush1.bf16.msra.mxu0 0
    %941 = vmatprep.subr.bf16.mxu0 0
    %942 = vmatpush1.bf16.msra.mxu0 0
    %943 = vmatprep.subr.bf16.mxu0 0
    %944 = vmatpush1.bf16.msra.mxu0 0
    %945 = vmatprep.subr.bf16.mxu0 0
    %946 = vmatpush1.bf16.msra.mxu0 0
    %947 = vmatprep.subr.bf16.mxu0 0
    %948 = vmatpush1.bf16.msra.mxu0 0
    %949 = vmatprep.subr.bf16.mxu0 0
    %950 = vmatpush1.bf16.msra.mxu0 0
    %951 = vmatprep.subr.bf16.mxu0 0
    %952 = vmatpush1.bf16.msra.mxu0 0
    %953 = vmatprep.mubr.bf16.mxu0 0
    %954 = vmatmul.mubr.bf16.gmra.mrb[0].mxu0 %v879
    %v955 = vpop.f32.mrb[0].mxu0
    %v956 = vadd.f32 %v877, %v955
    %v957 = vpop.f32.mrb[0].mxu0
    %v958 = vadd.f32 %v878, %v957
    %v959 = vpop.f32.mrb[0].mxu0
    %v960 = vpop.f32.mrb[0].mxu0
    %961 = vdwg.mxu0
    %v962 = vxor.u32 %v915, 2147483648
    %v963 = vmul.f32 %v962, 1.442695
    %v964 = vpow.pop %v963
    %v965 = vadd.f32 %v964, 1.0
    %v966 = vrcp.pop %v965
    %v967 = vmul.f32 1.0, %v966
    %v968 = vxor.u32 %v917, 2147483648
    %v969 = vmul.f32 %v968, 1.442695
    %v970 = vpow.pop %v969
    %v971 = vadd.f32 %v970, 1.0
    %v972 = vrcp.pop %v971
    %v973 = vmul.f32 1.0, %v972
    %v974 = vtanh.pop %v956
    %v975 = vxor.u32 %v958, 2147483648
    %v976 = vmul.f32 %v975, 1.442695
    %v977 = vpow.pop %v976
    %v978 = vadd.f32 %v977, 1.0
    %v979 = vrcp.pop %v978
    %v980 = vmul.f32 1.0, %v979
    %v981 = vmul.f32 %v973, %v865
    %v982 = vmul.f32 %v967, %v974
    %v983 = vadd.f32 %v981, %v982
    %v984 = vtanh.pop %v983
    %v985 = vmul.f32 %v980, %v984
    %v986 = vmul.f32 %v985, %v389
    %v987 = vadd.f32 %v986, %v396
    %s988 = scalar_lea.vmem [#allocation10], 40
    %989 = vst [vmem:[%s988] sm:$0xff] %v987
    %s990 = scalar_lea.vmem [#allocation4], 96
    %v991 = vld [vmem:[%s990] sm:$0xff]
    %v992 = vld [vmem:[%s990 + $0x8] sm:$0xff]
    %v993 = vunpack.c.l.bf16 %v991
    %v994 = vunpack.c.h.bf16 %v991
    %v995 = vunpack.c.l.bf16 %v992
    %v996 = vunpack.c.h.bf16 %v992
    %v997 = vpack.c.bf16 %v985, %v985
    %998 = vmatprep.subr.bf16.mxu0 %v216
    %999 = vmatpush1.bf16.msra.mxu0 %v215
    %1000 = vmatprep.subr.bf16.mxu0 %v220
    %1001 = vmatpush1.bf16.msra.mxu0 %v219
    %1002 = vmatprep.subr.bf16.mxu0 %v224
    %1003 = vmatpush1.bf16.msra.mxu0 %v223
    %1004 = vmatprep.subr.bf16.mxu0 %v228
    %1005 = vmatpush1.bf16.msra.mxu0 %v227
    %1006 = vmatprep.subr.bf16.mxu0 %v232
    %1007 = vmatpush1.bf16.msra.mxu0 %v231
    %1008 = vmatprep.subr.bf16.mxu0 %v236
    %1009 = vmatpush1.bf16.msra.mxu0 %v235
    %1010 = vmatprep.subr.bf16.mxu0 %v240
    %1011 = vmatpush1.bf16.msra.mxu0 %v239
    %1012 = vmatprep.subr.bf16.mxu0 %v244
    %1013 = vmatpush1.bf16.msra.mxu0 %v243
    %1014 = vmatprep.subr.bf16.mxu0 0
    %1015 = vmatpush1.bf16.msra.mxu0 0
    %1016 = vmatprep.subr.bf16.mxu0 0
    %1017 = vmatpush1.bf16.msra.mxu0 0
    %1018 = vmatprep.subr.bf16.mxu0 0
    %1019 = vmatpush1.bf16.msra.mxu0 0
    %1020 = vmatprep.subr.bf16.mxu0 0
    %1021 = vmatpush1.bf16.msra.mxu0 0
    %1022 = vmatprep.subr.bf16.mxu0 0
    %1023 = vmatpush1.bf16.msra.mxu0 0
    %1024 = vmatprep.subr.bf16.mxu0 0
    %1025 = vmatpush1.bf16.msra.mxu0 0
    %1026 = vmatprep.subr.bf16.mxu0 0
    %1027 = vmatpush1.bf16.msra.mxu0 0
    %1028 = vmatprep.subr.bf16.mxu0 0
    %1029 = vmatpush1.bf16.msra.mxu0 0
    %1030 = vmatprep.mubr.bf16.mxu0 0
    %1031 = vmatmul.mubr.bf16.gmra.mrb[0].mxu0 %v997
    %v1032 = vpop.f32.mrb[0].mxu0
    %v1033 = vadd.f32 %v993, %v1032
    %v1034 = vpop.f32.mrb[0].mxu0
    %v1035 = vadd.f32 %v994, %v1034
    %v1036 = vpop.f32.mrb[0].mxu0
    %v1037 = vpop.f32.mrb[0].mxu0
    %1038 = vdwg.mxu0
    %1039 = vmatprep.subr.bf16.mxu0 %v218
    %1040 = vmatpush1.bf16.msra.mxu0 %v217
    %1041 = vmatprep.subr.bf16.mxu0 %v222
    %1042 = vmatpush1.bf16.msra.mxu0 %v221
    %1043 = vmatprep.subr.bf16.mxu0 %v226
    %1044 = vmatpush1.bf16.msra.mxu0 %v225
    %1045 = vmatprep.subr.bf16.mxu0 %v230
    %1046 = vmatpush1.bf16.msra.mxu0 %v229
    %1047 = vmatprep.subr.bf16.mxu0 %v234
    %1048 = vmatpush1.bf16.msra.mxu0 %v233
    %1049 = vmatprep.subr.bf16.mxu0 %v238
    %1050 = vmatpush1.bf16.msra.mxu0 %v237
    %1051 = vmatprep.subr.bf16.mxu0 %v242
    %1052 = vmatpush1.bf16.msra.mxu0 %v241
    %1053 = vmatprep.subr.bf16.mxu0 %v246
    %1054 = vmatpush1.bf16.msra.mxu0 %v245
    %1055 = vmatprep.subr.bf16.mxu0 0
    %1056 = vmatpush1.bf16.msra.mxu0 0
    %1057 = vmatprep.subr.bf16.mxu0 0
    %1058 = vmatpush1.bf16.msra.mxu0 0
    %1059 = vmatprep.subr.bf16.mxu0 0
    %1060 = vmatpush1.bf16.msra.mxu0 0
    %1061 = vmatprep.subr.bf16.mxu0 0
    %1062 = vmatpush1.bf16.msra.mxu0 0
    %1063 = vmatprep.subr.bf16.mxu0 0
    %1064 = vmatpush1.bf16.msra.mxu0 0
    %1065 = vmatprep.subr.bf16.mxu0 0
    %1066 = vmatpush1.bf16.msra.mxu0 0
    %1067 = vmatprep.subr.bf16.mxu0 0
    %1068 = vmatpush1.bf16.msra.mxu0 0
    %1069 = vmatprep.subr.bf16.mxu0 0
    %1070 = vmatpush1.bf16.msra.mxu0 0
    %1071 = vmatprep.mubr.bf16.mxu0 0
    %1072 = vmatmul.mubr.bf16.gmra.mrb[0].mxu0 %v997
    %v1073 = vpop.f32.mrb[0].mxu0
    %v1074 = vadd.f32 %v995, %v1073
    %v1075 = vpop.f32.mrb[0].mxu0
    %v1076 = vadd.f32 %v996, %v1075
    %v1077 = vpop.f32.mrb[0].mxu0
    %v1078 = vpop.f32.mrb[0].mxu0
    %1079 = vdwg.mxu0
    %v1080 = vxor.u32 %v1033, 2147483648
    %v1081 = vmul.f32 %v1080, 1.442695
    %v1082 = vpow.pop %v1081
    %v1083 = vadd.f32 %v1082, 1.0
    %v1084 = vrcp.pop %v1083
    %v1085 = vmul.f32 1.0, %v1084
    %v1086 = vxor.u32 %v1035, 2147483648
    %v1087 = vmul.f32 %v1086, 1.442695
    %v1088 = vpow.pop %v1087
    %v1089 = vadd.f32 %v1088, 1.0
    %v1090 = vrcp.pop %v1089
    %v1091 = vmul.f32 1.0, %v1090
    %v1092 = vtanh.pop %v1074
    %v1093 = vxor.u32 %v1076, 2147483648
    %v1094 = vmul.f32 %v1093, 1.442695
    %v1095 = vpow.pop %v1094
    %v1096 = vadd.f32 %v1095, 1.0
    %v1097 = vrcp.pop %v1096
    %v1098 = vmul.f32 1.0, %v1097
    %v1099 = vmul.f32 %v1091, %v983
    %v1100 = vmul.f32 %v1085, %v1092
    %v1101 = vadd.f32 %v1099, %v1100
    %v1102 = vtanh.pop %v1101
    %v1103 = vmul.f32 %v1098, %v1102
    %v1104 = vmul.f32 %v1103, %v389
    %v1105 = vadd.f32 %v1104, %v396
    %s1106 = scalar_lea.vmem [#allocation10], 48
    %1107 = vst [vmem:[%s1106] sm:$0xff] %v1105
    %s1108 = scalar_lea.vmem [#allocation4], 112
    %v1109 = vld [vmem:[%s1108] sm:$0xff]
    %v1110 = vld [vmem:[%s1108 + $0x8] sm:$0xff]
    %v1111 = vunpack.c.l.bf16 %v1109
    %v1112 = vunpack.c.h.bf16 %v1109
    %v1113 = vunpack.c.l.bf16 %v1110
    %v1114 = vunpack.c.h.bf16 %v1110
    %v1115 = vpack.c.bf16 %v1103, %v1103
    %1116 = vmatprep.subr.bf16.mxu0 %v216
    %1117 = vmatpush1.bf16.msra.mxu0 %v215
    %1118 = vmatprep.subr.bf16.mxu0 %v220
    %1119 = vmatpush1.bf16.msra.mxu0 %v219
    %1120 = vmatprep.subr.bf16.mxu0 %v224
    %1121 = vmatpush1.bf16.msra.mxu0 %v223
    %1122 = vmatprep.subr.bf16.mxu0 %v228
    %1123 = vmatpush1.bf16.msra.mxu0 %v227
    %1124 = vmatprep.subr.bf16.mxu0 %v232
    %1125 = vmatpush1.bf16.msra.mxu0 %v231
    %1126 = vmatprep.subr.bf16.mxu0 %v236
    %1127 = vmatpush1.bf16.msra.mxu0 %v235
    %1128 = vmatprep.subr.bf16.mxu0 %v240
    %1129 = vmatpush1.bf16.msra.mxu0 %v239
    %1130 = vmatprep.subr.bf16.mxu0 %v244
    %1131 = vmatpush1.bf16.msra.mxu0 %v243
    %1132 = vmatprep.subr.bf16.mxu0 0
    %1133 = vmatpush1.bf16.msra.mxu0 0
    %1134 = vmatprep.subr.bf16.mxu0 0
    %1135 = vmatpush1.bf16.msra.mxu0 0
    %1136 = vmatprep.subr.bf16.mxu0 0
    %1137 = vmatpush1.bf16.msra.mxu0 0
    %1138 = vmatprep.subr.bf16.mxu0 0
    %1139 = vmatpush1.bf16.msra.mxu0 0
    %1140 = vmatprep.subr.bf16.mxu0 0
    %1141 = vmatpush1.bf16.msra.mxu0 0
    %1142 = vmatprep.subr.bf16.mxu0 0
    %1143 = vmatpush1.bf16.msra.mxu0 0
    %1144 = vmatprep.subr.bf16.mxu0 0
    %1145 = vmatpush1.bf16.msra.mxu0 0
    %1146 = vmatprep.subr.bf16.mxu0 0
    %1147 = vmatpush1.bf16.msra.mxu0 0
    %1148 = vmatprep.mubr.bf16.mxu0 0
    %1149 = vmatmul.mubr.bf16.gmra.mrb[0].mxu0 %v1115
    %v1150 = vpop.f32.mrb[0].mxu0
    %v1151 = vadd.f32 %v1111, %v1150
    %v1152 = vpop.f32.mrb[0].mxu0
    %v1153 = vadd.f32 %v1112, %v1152
    %v1154 = vpop.f32.mrb[0].mxu0
    %v1155 = vpop.f32.mrb[0].mxu0
    %1156 = vdwg.mxu0
    %1157 = vmatprep.subr.bf16.mxu0 %v218
    %1158 = vmatpush1.bf16.msra.mxu0 %v217
    %1159 = vmatprep.subr.bf16.mxu0 %v222
    %1160 = vmatpush1.bf16.msra.mxu0 %v221
    %1161 = vmatprep.subr.bf16.mxu0 %v226
    %1162 = vmatpush1.bf16.msra.mxu0 %v225
    %1163 = vmatprep.subr.bf16.mxu0 %v230
    %1164 = vmatpush1.bf16.msra.mxu0 %v229
    %1165 = vmatprep.subr.bf16.mxu0 %v234
    %1166 = vmatpush1.bf16.msra.mxu0 %v233
    %1167 = vmatprep.subr.bf16.mxu0 %v238
    %1168 = vmatpush1.bf16.msra.mxu0 %v237
    %1169 = vmatprep.subr.bf16.mxu0 %v242
    %1170 = vmatpush1.bf16.msra.mxu0 %v241
    %1171 = vmatprep.subr.bf16.mxu0 %v246
    %1172 = vmatpush1.bf16.msra.mxu0 %v245
    %1173 = vmatprep.subr.bf16.mxu0 0
    %1174 = vmatpush1.bf16.msra.mxu0 0
    %1175 = vmatprep.subr.bf16.mxu0 0
    %1176 = vmatpush1.bf16.msra.mxu0 0
    %1177 = vmatprep.subr.bf16.mxu0 0
    %1178 = vmatpush1.bf16.msra.mxu0 0
    %1179 = vmatprep.subr.bf16.mxu0 0
    %1180 = vmatpush1.bf16.msra.mxu0 0
    %1181 = vmatprep.subr.bf16.mxu0 0
    %1182 = vmatpush1.bf16.msra.mxu0 0
    %1183 = vmatprep.subr.bf16.mxu0 0
    %1184 = vmatpush1.bf16.msra.mxu0 0
    %1185 = vmatprep.subr.bf16.mxu0 0
    %1186 = vmatpush1.bf16.msra.mxu0 0
    %1187 = vmatprep.subr.bf16.mxu0 0
    %1188 = vmatpush1.bf16.msra.mxu0 0
    %1189 = vmatprep.mubr.bf16.mxu0 0
    %1190 = vmatmul.mubr.bf16.gmra.mrb[0].mxu0 %v1115
    %v1191 = vpop.f32.mrb[0].mxu0
    %v1192 = vadd.f32 %v1113, %v1191
    %v1193 = vpop.f32.mrb[0].mxu0
    %v1194 = vadd.f32 %v1114, %v1193
    %v1195 = vpop.f32.mrb[0].mxu0
    %v1196 = vpop.f32.mrb[0].mxu0
    %1197 = vdwg.mxu0
    %v1198 = vxor.u32 %v1151, 2147483648
    %v1199 = vmul.f32 %v1198, 1.442695
    %v1200 = vpow.pop %v1199
    %v1201 = vadd.f32 %v1200, 1.0
    %v1202 = vrcp.pop %v1201
    %v1203 = vmul.f32 1.0, %v1202
    %v1204 = vxor.u32 %v1153, 2147483648
    %v1205 = vmul.f32 %v1204, 1.442695
    %v1206 = vpow.pop %v1205
    %v1207 = vadd.f32 %v1206, 1.0
    %v1208 = vrcp.pop %v1207
    %v1209 = vmul.f32 1.0, %v1208
    %v1210 = vtanh.pop %v1192
    %v1211 = vxor.u32 %v1194, 2147483648
    %v1212 = vmul.f32 %v1211, 1.442695
    %v1213 = vpow.pop %v1212
    %v1214 = vadd.f32 %v1213, 1.0
    %v1215 = vrcp.pop %v1214
    %v1216 = vmul.f32 1.0, %v1215
    %v1217 = vmul.f32 %v1209, %v1101
    %v1218 = vmul.f32 %v1203, %v1210
    %v1219 = vadd.f32 %v1217, %v1218
    %v1220 = vtanh.pop %v1219
    %v1221 = vmul.f32 %v1216, %v1220
    %v1222 = vmul.f32 %v1221, %v389
    %v1223 = vadd.f32 %v1222, %v396
    %s1224 = scalar_lea.vmem [#allocation10], 56
    %1225 = vst [vmem:[%s1224] sm:$0xff] %v1223
    %1226 = vst [vmem:[#allocation2] sm:$0xff] %v1221
    %1227 = vst [vmem:[#allocation3] sm:$0xff] %v1219
    // Predicated region
    $region42: #{tpu_custom_call.1} parent=1 // pred_check
      %p1228 = pneg %p68
    $region43: #{tpu_custom_call.1} parent=1 // pred_check_branch
      %1230 = sbr.rel (%p1228) target = $region45
    $region44: #{tpu_custom_call.1} parent=1 // pred_region
      %1231 = vst [vmem:[#allocation11] sm:$0xff] %v1221
      %1232 = vst [vmem:[#allocation13] sm:$0xff] %v1219
    $region45: #{tpu_custom_call.1} parent=1 // pred_fallthru
      _
    // Predicated region
    $region46: #{tpu_custom_call.1} parent=1 // pred_check
      _
    $region47: #{tpu_custom_call.1} parent=1 // pred_check_branch
      %1234 = sbr.rel (0) target = $region49
    $region48: #{tpu_custom_call.1} parent=1 // pred_region
      %s1236 = ssub.s32 1024, 1024
      %1237 = vsyncadd [#allocation6], %s1236
      %s1238 = sshll.u32 [#allocation10], 4
      %s1239 = int_to_ptr.vmem [resolvable:$true] %s1238
      %1244 = dma.vmem_to_hbm [thread:$0]  %s1239, 1024, %s6, [#allocation6], 128, 128, 8
    $region49: #{tpu_custom_call.1} parent=1 // pred_fallthru
      _
    // Predicated region
    $region50: #{tpu_custom_call.1} parent=1 // pred_check
      _
    $region51: #{tpu_custom_call.1} parent=1 // pred_check_branch
      %1246 = sbr.rel (0) target = $region53
    $region52: #{tpu_custom_call.1} parent=1 // pred_region
      %s1248 = ssub.s32 128, 128
      %1249 = vsyncadd [#allocation12], %s1248
      %s1251 = sshll.u32 [#allocation11], 4
      %s1252 = int_to_ptr.vmem [resolvable:$true] %s1251
      %1254 = dma.vmem_to_hbm [thread:$0]  %s1252, 128, %s7, [#allocation12]
    $region53: #{tpu_custom_call.1} parent=1 // pred_fallthru
      _
    // Predicated region
    $region54: #{tpu_custom_call.1} parent=1 // pred_check
      _
    $region55: #{tpu_custom_call.1} parent=1 // pred_check_branch
      %1256 = sbr.rel (0) target = $region57
    $region56: #{tpu_custom_call.1} parent=1 // pred_region
      %s1258 = ssub.s32 128, 128
      %1259 = vsyncadd [#allocation12], %s1258
      %s1261 = sshll.u32 [#allocation13], 4
      %s1262 = int_to_ptr.vmem [resolvable:$true] %s1261
      %1264 = dma.vmem_to_hbm [thread:$0]  %s1262, 128, %s8, [#allocation12]
    $region57: #{tpu_custom_call.1} parent=1 // pred_fallthru
      _
    // Predicated region
    $region58: #{tpu_custom_call.1} parent=1 // pred_check
      _
    $region59: #{tpu_custom_call.1} parent=1 // pred_check_branch
      %1266 = sbr.rel (0) target = $region61
    $region60: #{tpu_custom_call.1} parent=1 // pred_region
      %1267 = dma.done [#allocation6], 1024
    $region61: #{tpu_custom_call.1} parent=1 // pred_fallthru
      _
    // Predicated region
    $region62: #{tpu_custom_call.1} parent=1 // pred_check
      _
    $region63: #{tpu_custom_call.1} parent=1 // pred_check_branch
      %1269 = sbr.rel (0) target = $region65
    $region64: #{tpu_custom_call.1} parent=1 // pred_region
      %1270 = dma.done [#allocation12], 128
    $region65: #{tpu_custom_call.1} parent=1 // pred_fallthru
      _
    // Predicated region
    $region66: #{tpu_custom_call.1} parent=1 // pred_check
      _
    $region67: #{tpu_custom_call.1} parent=1 // pred_check_branch
      %1272 = sbr.rel (0) target = $region69
    $region68: #{tpu_custom_call.1} parent=1 // pred_region
      %1273 = dma.done [#allocation12], 128
    $region69: #{tpu_custom_call.1} parent=1 // pred_fallthru
      _
    %1274 = vsyncpa [#allocation5], 1
    %1275 = vsyncpa [#allocation8], 1
    %1276 = vsyncpa [#allocation6], 1
    %1277 = vsyncpa [#allocation12], 1

</llo_original>
